<compile_context>
chip_gen: v5e
topology: v5e:2x2
jax: 0.10.0
libtpu: 0.0.40
codegen_flags: <defaults>
</compile_context>

<pallas_src>
import math

import jax
import jax.numpy as jnp
from jax.experimental import pallas as pl
from jax.experimental.pallas import tpu as pltpu

EPS = 1e-5


# ----------------------------------------------------------------------------
# Wrapper-side construction of the banded conv matrices (computed once per
# call from the raw conv weights; tiny at these shapes).
# ----------------------------------------------------------------------------
def _conv1_matrices(w1, w_in, w_out):
    """3x3 conv fused with the W-direction 2x upsample + zero padding.

    w1: (3, 3, Cin, Cout).  Returns ME0, ME1, MO0, MO1, each of shape
    (w_in*Cin, w_out*Cout), such that for the folded original-resolution
    activation rows a[j] (shape (w_in*Cin,)):
       conv1_out_row[2j]   = a[j-1] @ ME0 + a[j] @ ME1
       conv1_out_row[2j+1] = a[j]   @ MO0 + a[j+1] @ MO1
    (rows outside [0, h-1] are zero).
    """
    cin, cout = w1.shape[2], w1.shape[3]
    wo = jnp.arange(w_out)
    wi = jnp.arange(w_in)
    m = []
    for dh in range(3):
        m_dh = jnp.zeros((w_in * cin, w_out * cout), jnp.float32)
        for dw in range(3):
            src = wo + dw - 1                         # column on the upsampled grid
            valid = (src >= 0) & (src <= w_out - 1)   # W zero-padding
            src_orig = jnp.clip(src, 0, w_out - 1) // 2
            sel = ((wi[:, None] == src_orig[None, :]) & valid[None, :])
            m_dh = m_dh + jnp.kron(sel.astype(jnp.float32), w1[dh, dw])
        m.append(m_dh)
    return m[0], m[1] + m[2], m[0] + m[1], m[2]


def _conv2_matrices(w2, w_out):
    """Plain 3x3 conv (no upsample): M2_dh of shape (w_out*C, w_out*C)."""
    cout = w2.shape[3]
    wo = jnp.arange(w_out)
    wi = jnp.arange(w_out)
    mats = []
    for dh in range(3):
        m_dh = jnp.zeros((w_out * cout, w_out * cout), jnp.float32)
        for dw in range(3):
            src = wo + dw - 1
            valid = (src >= 0) & (src <= w_out - 1)
            sel = (wi[:, None] == src[None, :]) & valid[None, :]
            m_dh = m_dh + jnp.kron(sel.astype(jnp.float32), w2[dh, dw])
        mats.append(m_dh)
    return mats[0], mats[1], mats[2]


def _shortcut_matrix(ws, w_in, w_out):
    """1x1 conv fused with the W-direction 2x upsample: (w_in*Cin, w_out*Cout)."""
    wo = jnp.arange(w_out)
    wi = jnp.arange(w_in)
    sel = (wi[:, None] == (wo // 2)[None, :]).astype(jnp.float32)
    return jnp.kron(sel, ws)


# ----------------------------------------------------------------------------
# Kernel 1: BN1 + ReLU + (2x-upsample fused) conv1 -> parity-layout t (bf16)
#           + BN2 partial statistics (f32).
# ----------------------------------------------------------------------------
def _resgen_stage1_kernel(x_ref, sb1_ref, me0_ref, me1_ref, mo0_ref, mo1_ref,
                          c1b_ref, t_ref, stat_ref):
    bt, h, wc = x_ref.shape
    m = bt * h
    wcout = c1b_ref.shape[-1]

    # BN1 (pre-folded per-channel scale/bias tiled over W) + ReLU, on the
    # batch-stacked (bt*h, w*Cin) slab.
    x = x_ref[...].reshape(m, wc)
    a = jnp.maximum(x * sb1_ref[0:1, :] + sb1_ref[1:2, :], 0.0)

    # Per-image single-row shifts (conv H halo) via value concatenation; the
    # halo never crosses an image boundary.
    a3 = a.reshape(bt, h, wc)
    zrow = jnp.zeros((bt, 1, wc), jnp.float32)
    a_prev = jnp.concatenate([zrow, a3[:, :h - 1, :]], axis=1).reshape(m, wc)
    a_next = jnp.concatenate([a3[:, 1:, :], zrow], axis=1).reshape(m, wc)

    cb = c1b_ref[...]
    t_even = (jnp.dot(a_prev, me0_ref[...], preferred_element_type=jnp.float32)
              + jnp.dot(a, me1_ref[...], preferred_element_type=jnp.float32)
              + cb)
    t_odd = (jnp.dot(a, mo0_ref[...], preferred_element_type=jnp.float32)
             + jnp.dot(a_next, mo1_ref[...], preferred_element_type=jnp.float32)
             + cb)

    # BN2 partial statistics in f32 *before* the bf16 cast (sum / sum-of-squares
    # over all rows of this batch block, per output lane column).
    stat_ref[0, 0:1, :] = (jnp.sum(t_even, axis=0, keepdims=True)
                           + jnp.sum(t_odd, axis=0, keepdims=True))
    stat_ref[0, 1:2, :] = (jnp.sum(t_even * t_even, axis=0, keepdims=True)
                           + jnp.sum(t_odd * t_odd, axis=0, keepdims=True))

    # Parity layout: [even row | odd row] on the lane axis; bf16 in HBM.
    t_ref[:, :, 0:wcout] = t_even.reshape(bt, h, wcout).astype(t_ref.dtype)
    t_ref[:, :, wcout:2 * wcout] = t_odd.reshape(bt, h, wcout).astype(t_ref.dtype)


# ----------------------------------------------------------------------------
# Kernel 2: BN2 + ReLU + conv2 + 1x1-shortcut (upsample fused) + add.
# ----------------------------------------------------------------------------
def _resgen_stage2_kernel(t_ref, x_ref, sb2_ref, m20_ref, m21_ref, m22_ref,
                          cb_ref, ms_ref, o_ref):
    bt, h, wc = x_ref.shape
    m = bt * h
    wcout = cb_ref.shape[-1]

    # BN2 (f32 scale/bias applied to the bf16-loaded t) + ReLU, parity layout.
    u = jnp.maximum(
        t_ref[...].astype(jnp.float32).reshape(m, 2 * wcout) * sb2_ref[0:1, :]
        + sb2_ref[1:2, :], 0.0)
    e = u[:, 0:wcout]             # even upsampled rows u[2j]
    o = u[:, wcout:2 * wcout]     # odd  upsampled rows u[2j+1]

    # Per-image single-row shifts for the conv2 H halo.
    e3 = e.reshape(bt, h, wcout)
    o3 = o.reshape(bt, h, wcout)
    zrow = jnp.zeros((bt, 1, wcout), jnp.float32)
    o_prev = jnp.concatenate([zrow, o3[:, :h - 1, :]], axis=1).reshape(m, wcout)
    e_next = jnp.concatenate([e3[:, 1:, :], zrow], axis=1).reshape(m, wcout)

    c2b = cb_ref[0:1, :]
    bsb = cb_ref[1:2, :]
    r_even = (jnp.dot(o_prev, m20_ref[...], preferred_element_type=jnp.float32)
              + jnp.dot(e, m21_ref[...], preferred_element_type=jnp.float32)
              + jnp.dot(o, m22_ref[...], preferred_element_type=jnp.float32)
              + c2b)
    r_odd = (jnp.dot(e, m20_ref[...], preferred_element_type=jnp.float32)
             + jnp.dot(o, m21_ref[...], preferred_element_type=jnp.float32)
             + jnp.dot(e_next, m22_ref[...], preferred_element_type=jnp.float32)
             + c2b)

    # Shortcut: 1x1 conv + W-upsample as one matmul on the original-res input;
    # the H-upsample is the fact that the same row feeds both parities.
    s_rows = (jnp.dot(x_ref[...].reshape(m, wc), ms_ref[...],
                      preferred_element_type=jnp.float32) + bsb)

    o_ref[:, :, 0:wcout] = (r_even + s_rows).reshape(bt, h, wcout)
    o_ref[:, :, wcout:2 * wcout] = (r_odd + s_rows).reshape(bt, h, wcout)


# ----------------------------------------------------------------------------
# Helpers: batch-tile choice and per-generation VMEM budget.
# ----------------------------------------------------------------------------
def _pick_batch_tile(n, h, target_rows=256):
    """Largest divisor of n such that bt*h <= target_rows (MXU M dimension)."""
    cap = max(1, min(n, target_rows // max(h, 1)))
    bt = 1
    for c in range(1, cap + 1):
        if n % c == 0:
            bt = c
    return bt


def _vmem_limit_bytes():
    """Per-generation scoped-VMEM budget (v4/v5/v6: 128 MiB; v7x: 64 MiB/TC)."""
    try:
        kind = jax.devices()[0].device_kind.lower()
    except Exception:
        kind = ""
    if any(tag in kind for tag in ("v4", "v5", "v6")):
        return 96 * 1024 * 1024
    return 48 * 1024 * 1024


# ----------------------------------------------------------------------------
# Parameters + wrapper
# ----------------------------------------------------------------------------
def make_params(key, in_channels, out_channels):
    ks = jax.random.split(key, 10)

    def normal(k, shape, scale):
        return (scale * jax.random.normal(k, shape)).astype(jnp.float32)

    return dict(
        g1=1.0 + normal(ks[0], (in_channels,), 0.1),
        be1=normal(ks[1], (in_channels,), 0.1),
        w1=normal(ks[2], (3, 3, in_channels, out_channels),
                  1.0 / math.sqrt(9 * in_channels)),
        b1=normal(ks[3], (out_channels,), 0.05),
        g2=1.0 + normal(ks[4], (out_channels,), 0.1),
        be2=normal(ks[5], (out_channels,), 0.1),
        w2=normal(ks[6], (3, 3, out_channels, out_channels),
                  1.0 / math.sqrt(9 * out_channels)),
        b2=normal(ks[7], (out_channels,), 0.05),
        ws=normal(ks[8], (in_channels, out_channels),
                  1.0 / math.sqrt(in_channels)),
        bs=normal(ks[9], (out_channels,), 0.05),
    )


@jax.jit
def res_gen_block(x_nchw, params):
    # NCHW -> NHWC at the ORIGINAL resolution (no upsampled tensor ever hits HBM).
    x = jnp.transpose(x_nchw, (0, 2, 3, 1)).astype(jnp.float32)
    n, h, w, cin = x.shape
    cout = params["w1"].shape[-1]
    big_h, big_w = 2 * h, 2 * w
    wc = w * cin                # folded input lane width
    wcout = big_w * cout        # folded output lane width (one parity)

    bt = _pick_batch_tile(n, h)
    nblk = n // bt

    # BN1 batch statistics on the (small) original-resolution input, folded to
    # per-channel scale/bias.
    m1 = jnp.mean(x, axis=(0, 1, 2))
    v1 = jnp.mean(jnp.square(x - m1), axis=(0, 1, 2))
    scale1 = params["g1"] * jax.lax.rsqrt(v1 + EPS)
    bias1 = params["be1"] - m1 * scale1

    x_fold = x.reshape(n, h, wc)                      # lane-dense folded input

    me0, me1, mo0, mo1 = _conv1_matrices(params["w1"], w, big_w)
    sb1 = jnp.stack([jnp.tile(scale1, w), jnp.tile(bias1, w)])        # (2, wc)
    c1b = jnp.tile(params["b1"], big_w).reshape(1, wcout)

    blk_in = pl.BlockSpec((bt, h, wc), lambda i: (i, 0, 0))
    blk_t = pl.BlockSpec((bt, h, 2 * wcout), lambda i: (i, 0, 0))
    blk_stat = pl.BlockSpec((1, 2, wcout), lambda i: (i, 0, 0))

    def const(shape):
        return pl.BlockSpec(shape, lambda i: tuple(0 for _ in shape))

    cparams = pltpu.CompilerParams(
        dimension_semantics=("parallel",),            # megacore-shard over batch
        vmem_limit_bytes=_vmem_limit_bytes())

    # ---- stage 1: BN1 + ReLU + upsample-fused conv1 -> bf16 parity layout +
    #               BN2 partial sums ----
    t_pair, stats = pl.pallas_call(
        _resgen_stage1_kernel,
        out_shape=(jax.ShapeDtypeStruct((n, h, 2 * wcout), jnp.bfloat16),
                   jax.ShapeDtypeStruct((nblk, 2, wcout), jnp.float32)),
        grid=(nblk,),
        in_specs=[blk_in, const((2, wc)),
                  const((wc, wcout)), const((wc, wcout)),
                  const((wc, wcout)), const((wc, wcout)),
                  const((1, wcout))],
        out_specs=(blk_t, blk_stat),
        compiler_params=cparams,
    )(x_fold, sb1, me0, me1, mo0, mo1, c1b)

    # ---- BN2 statistics from the in-kernel f32 partial sums (no extra HBM
    #      pass over t_pair) ----
    sums = jnp.sum(stats, axis=0)                     # (2, wcout)
    cnt = jnp.float32(n * big_h * big_w)
    sum_t = jnp.sum(sums[0].reshape(big_w, cout), axis=0)
    sum_t2 = jnp.sum(sums[1].reshape(big_w, cout), axis=0)
    m2 = sum_t / cnt
    v2 = jnp.maximum(sum_t2 / cnt - m2 * m2, 0.0)
    scale2 = params["g2"] * jax.lax.rsqrt(v2 + EPS)
    bias2 = params["be2"] - m2 * scale2

    m20, m21, m22 = _conv2_matrices(params["w2"], big_w)
    ms = _shortcut_matrix(params["ws"], w, big_w)
    sb2 = jnp.stack([jnp.tile(scale2, 2 * big_w),
                     jnp.tile(bias2, 2 * big_w)])                     # (2, 2*wcout)
    cb2 = jnp.stack([jnp.tile(params["b2"], big_w),
                     jnp.tile(params["bs"], big_w)])                  # (2, wcout)

    # ---- stage 2: BN2 + ReLU + conv2 + shortcut + add ----
    out_pair = pl.pallas_call(
        _resgen_stage2_kernel,
        out_shape=jax.ShapeDtypeStruct((n, h, 2 * wcout), jnp.float32),
        grid=(nblk,),
        in_specs=[blk_t, blk_in, const((2, 2 * wcout)),
                  const((wcout, wcout)), const((wcout, wcout)),
                  const((wcout, wcout)),
                  const((2, wcout)), const((wc, wcout))],
        out_specs=blk_t,
        compiler_params=cparams,
    )(t_pair, x_fold, sb2, m20, m21, m22, cb2, ms)

    # Parity layout (n, h, [even|odd]*W*Cout) -> (n, H, W, Cout): free row-major
    # reshape, then back to NCHW.
    out = out_pair.reshape(n, big_h, big_w, cout)
    return jnp.transpose(out, (0, 3, 1, 2))


# ----------------------------------------------------------------------------
# Pure-JAX reference (exact PyTorch op order) and self-check
# ----------------------------------------------------------------------------
def res_gen_block_reference(x_nchw, p):
    x = jnp.transpose(x_nchw, (0, 2, 3, 1)).astype(jnp.float32)

    def bn(v, g, b):
        m = jnp.mean(v, axis=(0, 1, 2), keepdims=True)
        var = jnp.mean((v - m) ** 2, axis=(0, 1, 2), keepdims=True)
        return (v - m) / jnp.sqrt(var + EPS) * g + b

    def up(v):
        return jnp.repeat(jnp.repeat(v, 2, axis=1), 2, axis=2)

    def conv(v, w, b, pad):
        y = jax.lax.conv_general_dilated(
            v, w, window_strides=(1, 1), padding=((pad, pad), (pad, pad)),
            dimension_numbers=("NHWC", "HWIO", "NHWC"),
            precision=jax.lax.Precision.HIGHEST)
        return y + b

    r = jax.nn.relu(bn(x, p["g1"], p["be1"]))
    r = up(r)
    r = conv(r, p["w1"], p["b1"], 1)
    r = jax.nn.relu(bn(r, p["g2"], p["be2"]))
    r = conv(r, p["w2"], p["b2"], 1)
    cin, cout = p["ws"].shape
    s = conv(up(x), p["ws"].reshape(1, 1, cin, cout), p["bs"], 0)
    return jnp.transpose(r + s, (0, 3, 1, 2))


if __name__ == "__main__":
    key = jax.random.PRNGKey(0)
    kx, kp = jax.random.split(key)
    in_ch, out_ch = 4, 8
    x = jax.random.normal(kx, (2, in_ch, 16, 16), dtype=jnp.float32)
    params = make_params(kp, in_ch, out_ch)

    y = jax.block_until_ready(res_gen_block(x, params))
    assert y.shape == (2, out_ch, 32, 32), y.shape

    y_ref = res_gen_block_reference(x, params)
    ref_scale = float(jnp.max(jnp.abs(y_ref)))
    err = float(jnp.max(jnp.abs(y - y_ref)))
    # Tolerance accounts for the bf16 intermediate (conv1 output stored in HBM
    # as bf16; all accumulation and BN2 statistics stay f32).
    assert err <= 2e-3 + 2e-2 * ref_scale, f"max abs err {err} (scale {ref_scale})"
    print("KERNEL_OK")
</pallas_src>

<mosaic_0001>
module attributes {stable_mosaic.version = 11 : i64} {
  func.func @_resgen_stage1_kernel(%arg0: i32, %arg1: memref<2x16x64xf32, #tpu.memory_space<vmem>>, %arg2: memref<2x64xf32, #tpu.memory_space<vmem>>, %arg3: memref<64x256xf32, #tpu.memory_space<vmem>>, %arg4: memref<64x256xf32, #tpu.memory_space<vmem>>, %arg5: memref<64x256xf32, #tpu.memory_space<vmem>>, %arg6: memref<64x256xf32, #tpu.memory_space<vmem>>, %arg7: memref<1x256xf32, #tpu.memory_space<vmem>>, %arg8: memref<2x16x512xbf16, #tpu.memory_space<vmem>>, %arg9: memref<1x2x256xf32, #tpu.memory_space<vmem>>) attributes {dimension_semantics = [#tpu.dimension_semantics<parallel>], iteration_bounds = array<i64: 1>, scalar_prefetch = 0 : i64, scratch_operands = 0 : i64, tpu.core_type = #tpu.core_type<tc>, window_params = [{transform_indices = @transform_0, window_bounds = array<i64: 2, 16, 64>}, {pipeline_mode = #tpu.pipeline_mode<synchronous>, transform_indices = @transform_1, window_bounds = array<i64: 2, 64>}, {pipeline_mode = #tpu.pipeline_mode<synchronous>, transform_indices = @transform_2, window_bounds = array<i64: 64, 256>}, {pipeline_mode = #tpu.pipeline_mode<synchronous>, transform_indices = @transform_3, window_bounds = array<i64: 64, 256>}, {pipeline_mode = #tpu.pipeline_mode<synchronous>, transform_indices = @transform_4, window_bounds = array<i64: 64, 256>}, {pipeline_mode = #tpu.pipeline_mode<synchronous>, transform_indices = @transform_5, window_bounds = array<i64: 64, 256>}, {pipeline_mode = #tpu.pipeline_mode<synchronous>, transform_indices = @transform_6, window_bounds = array<i64: 1, 256>}, {transform_indices = @transform_7, window_bounds = array<i64: 2, 16, 512>}, {transform_indices = @transform_8, window_bounds = array<i64: 1, 2, 256>}]} {
    %c0 = arith.constant 0 : index
    %c0_0 = arith.constant 0 : index
    %c0_1 = arith.constant 0 : index
    %0 = vector.load %arg1[%c0, %c0_0, %c0_1] : memref<2x16x64xf32, #tpu.memory_space<vmem>>, vector<2x16x64xf32>
    %1 = vector.shape_cast %0 : vector<2x16x64xf32> to vector<32x64xf32>
    %c0_2 = arith.constant 0 : index
    %c0_3 = arith.constant 0 : index
    %2 = vector.load %arg2[%c0_2, %c0_3] : memref<2x64xf32, #tpu.memory_space<vmem>>, vector<1x64xf32>
    %3 = vector.broadcast %2 : vector<1x64xf32> to vector<32x64xf32>
    %4 = arith.mulf %1, %3 : vector<32x64xf32>
    %c1 = arith.constant 1 : index
    %c0_4 = arith.constant 0 : index
    %5 = vector.load %arg2[%c1, %c0_4] : memref<2x64xf32, #tpu.memory_space<vmem>>, vector<1x64xf32>
    %6 = vector.broadcast %5 : vector<1x64xf32> to vector<32x64xf32>
    %7 = arith.addf %4, %6 : vector<32x64xf32>
    %cst = arith.constant 0.000000e+00 : f32
    %8 = vector.broadcast %cst : f32 to vector<32x64xf32>
    %9 = arith.maximumf %7, %8 : vector<32x64xf32>
    %10 = vector.shape_cast %9 : vector<32x64xf32> to vector<2x16x64xf32>
    %cst_5 = arith.constant 0.000000e+00 : f32
    %11 = vector.broadcast %cst_5 : f32 to vector<2x1x64xf32>
    %12 = vector.extract_strided_slice %10 {offsets = [0, 0, 0], sizes = [2, 15, 64], strides = [1, 1, 1]} : vector<2x16x64xf32> to vector<2x15x64xf32>
    %13 = tpu.concatenate %11, %12 in 1 : vector<2x1x64xf32>, vector<2x15x64xf32> -> vector<2x16x64xf32>
    %14 = vector.shape_cast %13 : vector<2x16x64xf32> to vector<32x64xf32>
    %15 = vector.extract_strided_slice %10 {offsets = [0, 1, 0], sizes = [2, 15, 64], strides = [1, 1, 1]} : vector<2x16x64xf32> to vector<2x15x64xf32>
    %16 = tpu.concatenate %15, %11 in 1 : vector<2x15x64xf32>, vector<2x1x64xf32> -> vector<2x16x64xf32>
    %17 = vector.shape_cast %16 : vector<2x16x64xf32> to vector<32x64xf32>
    %c0_6 = arith.constant 0 : index
    %c0_7 = arith.constant 0 : index
    %18 = vector.load %arg7[%c0_6, %c0_7] : memref<1x256xf32, #tpu.memory_space<vmem>>, vector<1x256xf32>
    %c0_8 = arith.constant 0 : index
    %c0_9 = arith.constant 0 : index
    %19 = vector.load %arg3[%c0_8, %c0_9] : memref<64x256xf32, #tpu.memory_space<vmem>>, vector<64x256xf32>
    %cst_10 = arith.constant dense<0.000000e+00> : vector<32x256xf32>
    %20 = tpu.matmul %14, %19, %cst_10 {dimension_numbers = #tpu.dot_dimension_numbers<[1], [0], [0], [1], [0, 0, 1, 1], [], []>} : vector<32x64xf32>, vector<64x256xf32>, vector<32x256xf32> -> vector<32x256xf32>
    %c0_11 = arith.constant 0 : index
    %c0_12 = arith.constant 0 : index
    %21 = vector.load %arg4[%c0_11, %c0_12] : memref<64x256xf32, #tpu.memory_space<vmem>>, vector<64x256xf32>
    %cst_13 = arith.constant dense<0.000000e+00> : vector<32x256xf32>
    %22 = tpu.matmul %9, %21, %cst_13 {dimension_numbers = #tpu.dot_dimension_numbers<[1], [0], [0], [1], [0, 0, 1, 1], [], []>} : vector<32x64xf32>, vector<64x256xf32>, vector<32x256xf32> -> vector<32x256xf32>
    %23 = arith.addf %20, %22 : vector<32x256xf32>
    %24 = vector.broadcast %18 : vector<1x256xf32> to vector<32x256xf32>
    %25 = arith.addf %23, %24 : vector<32x256xf32>
    %c0_14 = arith.constant 0 : index
    %c0_15 = arith.constant 0 : index
    %26 = vector.load %arg5[%c0_14, %c0_15] : memref<64x256xf32, #tpu.memory_space<vmem>>, vector<64x256xf32>
    %cst_16 = arith.constant dense<0.000000e+00> : vector<32x256xf32>
    %27 = tpu.matmul %9, %26, %cst_16 {dimension_numbers = #tpu.dot_dimension_numbers<[1], [0], [0], [1], [0, 0, 1, 1], [], []>} : vector<32x64xf32>, vector<64x256xf32>, vector<32x256xf32> -> vector<32x256xf32>
    %c0_17 = arith.constant 0 : index
    %c0_18 = arith.constant 0 : index
    %28 = vector.load %arg6[%c0_17, %c0_18] : memref<64x256xf32, #tpu.memory_space<vmem>>, vector<64x256xf32>
    %cst_19 = arith.constant dense<0.000000e+00> : vector<32x256xf32>
    %29 = tpu.matmul %17, %28, %cst_19 {dimension_numbers = #tpu.dot_dimension_numbers<[1], [0], [0], [1], [0, 0, 1, 1], [], []>} : vector<32x64xf32>, vector<64x256xf32>, vector<32x256xf32> -> vector<32x256xf32>
    %30 = arith.addf %27, %29 : vector<32x256xf32>
    %31 = vector.broadcast %18 : vector<1x256xf32> to vector<32x256xf32>
    %32 = arith.addf %30, %31 : vector<32x256xf32>
    %cst_20 = arith.constant dense<0.000000e+00> : vector<256xf32>
    %33 = vector.multi_reduction <add>, %25, %cst_20 [0] : vector<32x256xf32> to vector<256xf32>
    %34 = vector.shape_cast %33 : vector<256xf32> to vector<1x256xf32>
    %cst_21 = arith.constant dense<0.000000e+00> : vector<256xf32>
    %35 = vector.multi_reduction <add>, %32, %cst_21 [0] : vector<32x256xf32> to vector<256xf32>
    %36 = vector.shape_cast %35 : vector<256xf32> to vector<1x256xf32>
    %37 = arith.addf %34, %36 : vector<1x256xf32>
    %c0_22 = arith.constant 0 : index
    %c0_23 = arith.constant 0 : index
    %c0_24 = arith.constant 0 : index
    %38 = vector.load %arg9[%c0_22, %c0_23, %c0_24] : memref<1x2x256xf32, #tpu.memory_space<vmem>>, vector<1x1x256xf32>
    %39 = vector.shape_cast %38 : vector<1x1x256xf32> to vector<1x256xf32>
    %40 = vector.shape_cast %37 : vector<1x256xf32> to vector<1x1x256xf32>
    tpu.vector_store %arg9[%c0_22, %c0_23, %c0_24], %40 {strides = array<i32>} : memref<1x2x256xf32, #tpu.memory_space<vmem>>, vector<1x1x256xf32>,
    %41 = arith.mulf %25, %25 : vector<32x256xf32>
    %cst_25 = arith.constant dense<0.000000e+00> : vector<256xf32>
    %42 = vector.multi_reduction <add>, %41, %cst_25 [0] : vector<32x256xf32> to vector<256xf32>
    %43 = vector.shape_cast %42 : vector<256xf32> to vector<1x256xf32>
    %44 = arith.mulf %32, %32 : vector<32x256xf32>
    %cst_26 = arith.constant dense<0.000000e+00> : vector<256xf32>
    %45 = vector.multi_reduction <add>, %44, %cst_26 [0] : vector<32x256xf32> to vector<256xf32>
    %46 = vector.shape_cast %45 : vector<256xf32> to vector<1x256xf32>
    %47 = arith.addf %43, %46 : vector<1x256xf32>
    %c0_27 = arith.constant 0 : index
    %c1_28 = arith.constant 1 : index
    %c0_29 = arith.constant 0 : index
    %48 = vector.load %arg9[%c0_27, %c1_28, %c0_29] : memref<1x2x256xf32, #tpu.memory_space<vmem>>, vector<1x1x256xf32>
    %49 = vector.shape_cast %48 : vector<1x1x256xf32> to vector<1x256xf32>
    %50 = vector.shape_cast %47 : vector<1x256xf32> to vector<1x1x256xf32>
    tpu.vector_store %arg9[%c0_27, %c1_28, %c0_29], %50 {strides = array<i32>} : memref<1x2x256xf32, #tpu.memory_space<vmem>>, vector<1x1x256xf32>,
    %51 = vector.shape_cast %25 : vector<32x256xf32> to vector<2x16x256xf32>
    %52 = arith.truncf %51 : vector<2x16x256xf32> to vector<2x16x256xbf16>
    %c0_30 = arith.constant 0 : index
    %c0_31 = arith.constant 0 : index
    %c0_32 = arith.constant 0 : index
    %53 = vector.load %arg8[%c0_30, %c0_31, %c0_32] : memref<2x16x512xbf16, #tpu.memory_space<vmem>>, vector<2x16x256xbf16>
    tpu.vector_store %arg8[%c0_30, %c0_31, %c0_32], %52 {strides = array<i32>} : memref<2x16x512xbf16, #tpu.memory_space<vmem>>, vector<2x16x256xbf16>,
    %54 = vector.shape_cast %32 : vector<32x256xf32> to vector<2x16x256xf32>
    %55 = arith.truncf %54 : vector<2x16x256xf32> to vector<2x16x256xbf16>
    %c0_33 = arith.constant 0 : index
    %c0_34 = arith.constant 0 : index
    %c256 = arith.constant 256 : index
    %56 = vector.load %arg8[%c0_33, %c0_34, %c256] : memref<2x16x512xbf16, #tpu.memory_space<vmem>>, vector<2x16x256xbf16>
    tpu.vector_store %arg8[%c0_33, %c0_34, %c256], %55 {strides = array<i32>} : memref<2x16x512xbf16, #tpu.memory_space<vmem>>, vector<2x16x256xbf16>,
    return
  }
  func.func @transform_0(%arg0: i32) -> (i32, i32, i32) {
    %c0_i32 = arith.constant 0 : i32
    %c0_i32_0 = arith.constant 0 : i32
    %c0_i32_1 = arith.constant 0 : i32
    return %arg0, %c0_i32, %c0_i32_0 : i32, i32, i32
  }
  func.func @transform_1(%arg0: i32) -> (i32, i32) {
    %c0_i32 = arith.constant 0 : i32
    %c0_i32_0 = arith.constant 0 : i32
    %c0_i32_1 = arith.constant 0 : i32
    return %c0_i32, %c0_i32_0 : i32, i32
  }
  func.func @transform_2(%arg0: i32) -> (i32, i32) {
    %c0_i32 = arith.constant 0 : i32
    %c0_i32_0 = arith.constant 0 : i32
    %c0_i32_1 = arith.constant 0 : i32
    return %c0_i32, %c0_i32_0 : i32, i32
  }
  func.func @transform_3(%arg0: i32) -> (i32, i32) {
    %c0_i32 = arith.constant 0 : i32
    %c0_i32_0 = arith.constant 0 : i32
    %c0_i32_1 = arith.constant 0 : i32
    return %c0_i32, %c0_i32_0 : i32, i32
  }
  func.func @transform_4(%arg0: i32) -> (i32, i32) {
    %c0_i32 = arith.constant 0 : i32
    %c0_i32_0 = arith.constant 0 : i32
    %c0_i32_1 = arith.constant 0 : i32
    return %c0_i32, %c0_i32_0 : i32, i32
  }
  func.func @transform_5(%arg0: i32) -> (i32, i32) {
    %c0_i32 = arith.constant 0 : i32
    %c0_i32_0 = arith.constant 0 : i32
    %c0_i32_1 = arith.constant 0 : i32
    return %c0_i32, %c0_i32_0 : i32, i32
  }
  func.func @transform_6(%arg0: i32) -> (i32, i32) {
    %c0_i32 = arith.constant 0 : i32
    %c0_i32_0 = arith.constant 0 : i32
    %c0_i32_1 = arith.constant 0 : i32
    return %c0_i32, %c0_i32_0 : i32, i32
  }
  func.func @transform_7(%arg0: i32) -> (i32, i32, i32) {
    %c0_i32 = arith.constant 0 : i32
    %c0_i32_0 = arith.constant 0 : i32
    %c0_i32_1 = arith.constant 0 : i32
    return %arg0, %c0_i32, %c0_i32_0 : i32, i32, i32
  }
  func.func @transform_8(%arg0: i32) -> (i32, i32, i32) {
    %c0_i32 = arith.constant 0 : i32
    %c0_i32_0 = arith.constant 0 : i32
    %c0_i32_1 = arith.constant 0 : i32
    return %arg0, %c0_i32, %c0_i32_0 : i32, i32, i32
  }
}

module attributes {stable_mosaic.version = 11 : i64} {
  func.func @_resgen_stage2_kernel(%arg0: i32, %arg1: memref<2x16x512xbf16, #tpu.memory_space<vmem>>, %arg2: memref<2x16x64xf32, #tpu.memory_space<vmem>>, %arg3: memref<2x512xf32, #tpu.memory_space<vmem>>, %arg4: memref<256x256xf32, #tpu.memory_space<vmem>>, %arg5: memref<256x256xf32, #tpu.memory_space<vmem>>, %arg6: memref<256x256xf32, #tpu.memory_space<vmem>>, %arg7: memref<2x256xf32, #tpu.memory_space<vmem>>, %arg8: memref<64x256xf32, #tpu.memory_space<vmem>>, %arg9: memref<2x16x512xf32, #tpu.memory_space<vmem>>) attributes {dimension_semantics = [#tpu.dimension_semantics<parallel>], iteration_bounds = array<i64: 1>, scalar_prefetch = 0 : i64, scratch_operands = 0 : i64, tpu.core_type = #tpu.core_type<tc>, window_params = [{transform_indices = @transform_0, window_bounds = array<i64: 2, 16, 512>}, {transform_indices = @transform_1, window_bounds = array<i64: 2, 16, 64>}, {pipeline_mode = #tpu.pipeline_mode<synchronous>, transform_indices = @transform_2, window_bounds = array<i64: 2, 512>}, {pipeline_mode = #tpu.pipeline_mode<synchronous>, transform_indices = @transform_3, window_bounds = array<i64: 256, 256>}, {pipeline_mode = #tpu.pipeline_mode<synchronous>, transform_indices = @transform_4, window_bounds = array<i64: 256, 256>}, {pipeline_mode = #tpu.pipeline_mode<synchronous>, transform_indices = @transform_5, window_bounds = array<i64: 256, 256>}, {pipeline_mode = #tpu.pipeline_mode<synchronous>, transform_indices = @transform_6, window_bounds = array<i64: 2, 256>}, {pipeline_mode = #tpu.pipeline_mode<synchronous>, transform_indices = @transform_7, window_bounds = array<i64: 64, 256>}, {transform_indices = @transform_8, window_bounds = array<i64: 2, 16, 512>}]} {
    %c0 = arith.constant 0 : index
    %c0_0 = arith.constant 0 : index
    %c0_1 = arith.constant 0 : index
    %0 = vector.load %arg1[%c0, %c0_0, %c0_1] : memref<2x16x512xbf16, #tpu.memory_space<vmem>>, vector<2x16x512xbf16>
    %1 = arith.extf %0 : vector<2x16x512xbf16> to vector<2x16x512xf32>
    %2 = vector.shape_cast %1 : vector<2x16x512xf32> to vector<32x512xf32>
    %c0_2 = arith.constant 0 : index
    %c0_3 = arith.constant 0 : index
    %3 = vector.load %arg3[%c0_2, %c0_3] : memref<2x512xf32, #tpu.memory_space<vmem>>, vector<1x512xf32>
    %4 = vector.broadcast %3 : vector<1x512xf32> to vector<32x512xf32>
    %5 = arith.mulf %2, %4 : vector<32x512xf32>
    %c1 = arith.constant 1 : index
    %c0_4 = arith.constant 0 : index
    %6 = vector.load %arg3[%c1, %c0_4] : memref<2x512xf32, #tpu.memory_space<vmem>>, vector<1x512xf32>
    %7 = vector.broadcast %6 : vector<1x512xf32> to vector<32x512xf32>
    %8 = arith.addf %5, %7 : vector<32x512xf32>
    %cst = arith.constant 0.000000e+00 : f32
    %9 = vector.broadcast %cst : f32 to vector<32x512xf32>
    %10 = arith.maximumf %8, %9 : vector<32x512xf32>
    %11 = vector.extract_strided_slice %10 {offsets = [0, 0], sizes = [32, 256], strides = [1, 1]} : vector<32x512xf32> to vector<32x256xf32>
    %12 = vector.extract_strided_slice %10 {offsets = [0, 256], sizes = [32, 256], strides = [1, 1]} : vector<32x512xf32> to vector<32x256xf32>
    %13 = vector.shape_cast %11 : vector<32x256xf32> to vector<2x16x256xf32>
    %14 = vector.shape_cast %12 : vector<32x256xf32> to vector<2x16x256xf32>
    %cst_5 = arith.constant 0.000000e+00 : f32
    %15 = vector.broadcast %cst_5 : f32 to vector<2x1x256xf32>
    %16 = vector.extract_strided_slice %14 {offsets = [0, 0, 0], sizes = [2, 15, 256], strides = [1, 1, 1]} : vector<2x16x256xf32> to vector<2x15x256xf32>
    %17 = tpu.concatenate %15, %16 in 1 : vector<2x1x256xf32>, vector<2x15x256xf32> -> vector<2x16x256xf32>
    %18 = vector.shape_cast %17 : vector<2x16x256xf32> to vector<32x256xf32>
    %19 = vector.extract_strided_slice %13 {offsets = [0, 1, 0], sizes = [2, 15, 256], strides = [1, 1, 1]} : vector<2x16x256xf32> to vector<2x15x256xf32>
    %20 = tpu.concatenate %19, %15 in 1 : vector<2x15x256xf32>, vector<2x1x256xf32> -> vector<2x16x256xf32>
    %21 = vector.shape_cast %20 : vector<2x16x256xf32> to vector<32x256xf32>
    %c0_6 = arith.constant 0 : index
    %c0_7 = arith.constant 0 : index
    %22 = vector.load %arg7[%c0_6, %c0_7] : memref<2x256xf32, #tpu.memory_space<vmem>>, vector<1x256xf32>
    %c1_8 = arith.constant 1 : index
    %c0_9 = arith.constant 0 : index
    %23 = vector.load %arg7[%c1_8, %c0_9] : memref<2x256xf32, #tpu.memory_space<vmem>>, vector<1x256xf32>
    %c0_10 = arith.constant 0 : index
    %c0_11 = arith.constant 0 : index
    %24 = vector.load %arg4[%c0_10, %c0_11] : memref<256x256xf32, #tpu.memory_space<vmem>>, vector<256x256xf32>
    %cst_12 = arith.constant dense<0.000000e+00> : vector<32x256xf32>
    %25 = tpu.matmul %18, %24, %cst_12 {dimension_numbers = #tpu.dot_dimension_numbers<[1], [0], [0], [1], [0, 0, 1, 1], [], []>} : vector<32x256xf32>, vector<256x256xf32>, vector<32x256xf32> -> vector<32x256xf32>
    %c0_13 = arith.constant 0 : index
    %c0_14 = arith.constant 0 : index
    %26 = vector.load %arg5[%c0_13, %c0_14] : memref<256x256xf32, #tpu.memory_space<vmem>>, vector<256x256xf32>
    %cst_15 = arith.constant dense<0.000000e+00> : vector<32x256xf32>
    %27 = tpu.matmul %11, %26, %cst_15 {dimension_numbers = #tpu.dot_dimension_numbers<[1], [0], [0], [1], [0, 0, 1, 1], [], []>} : vector<32x256xf32>, vector<256x256xf32>, vector<32x256xf32> -> vector<32x256xf32>
    %28 = arith.addf %25, %27 : vector<32x256xf32>
    %c0_16 = arith.constant 0 : index
    %c0_17 = arith.constant 0 : index
    %29 = vector.load %arg6[%c0_16, %c0_17] : memref<256x256xf32, #tpu.memory_space<vmem>>, vector<256x256xf32>
    %cst_18 = arith.constant dense<0.000000e+00> : vector<32x256xf32>
    %30 = tpu.matmul %12, %29, %cst_18 {dimension_numbers = #tpu.dot_dimension_numbers<[1], [0], [0], [1], [0, 0, 1, 1], [], []>} : vector<32x256xf32>, vector<256x256xf32>, vector<32x256xf32> -> vector<32x256xf32>
    %31 = arith.addf %28, %30 : vector<32x256xf32>
    %32 = vector.broadcast %22 : vector<1x256xf32> to vector<32x256xf32>
    %33 = arith.addf %31, %32 : vector<32x256xf32>
    %c0_19 = arith.constant 0 : index
    %c0_20 = arith.constant 0 : index
    %34 = vector.load %arg4[%c0_19, %c0_20] : memref<256x256xf32, #tpu.memory_space<vmem>>, vector<256x256xf32>
    %cst_21 = arith.constant dense<0.000000e+00> : vector<32x256xf32>
    %35 = tpu.matmul %11, %34, %cst_21 {dimension_numbers = #tpu.dot_dimension_numbers<[1], [0], [0], [1], [0, 0, 1, 1], [], []>} : vector<32x256xf32>, vector<256x256xf32>, vector<32x256xf32> -> vector<32x256xf32>
    %c0_22 = arith.constant 0 : index
    %c0_23 = arith.constant 0 : index
    %36 = vector.load %arg5[%c0_22, %c0_23] : memref<256x256xf32, #tpu.memory_space<vmem>>, vector<256x256xf32>
    %cst_24 = arith.constant dense<0.000000e+00> : vector<32x256xf32>
    %37 = tpu.matmul %12, %36, %cst_24 {dimension_numbers = #tpu.dot_dimension_numbers<[1], [0], [0], [1], [0, 0, 1, 1], [], []>} : vector<32x256xf32>, vector<256x256xf32>, vector<32x256xf32> -> vector<32x256xf32>
    %38 = arith.addf %35, %37 : vector<32x256xf32>
    %c0_25 = arith.constant 0 : index
    %c0_26 = arith.constant 0 : index
    %39 = vector.load %arg6[%c0_25, %c0_26] : memref<256x256xf32, #tpu.memory_space<vmem>>, vector<256x256xf32>
    %cst_27 = arith.constant dense<0.000000e+00> : vector<32x256xf32>
    %40 = tpu.matmul %21, %39, %cst_27 {dimension_numbers = #tpu.dot_dimension_numbers<[1], [0], [0], [1], [0, 0, 1, 1], [], []>} : vector<32x256xf32>, vector<256x256xf32>, vector<32x256xf32> -> vector<32x256xf32>
    %41 = arith.addf %38, %40 : vector<32x256xf32>
    %42 = vector.broadcast %22 : vector<1x256xf32> to vector<32x256xf32>
    %43 = arith.addf %41, %42 : vector<32x256xf32>
    %c0_28 = arith.constant 0 : index
    %c0_29 = arith.constant 0 : index
    %c0_30 = arith.constant 0 : index
    %44 = vector.load %arg2[%c0_28, %c0_29, %c0_30] : memref<2x16x64xf32, #tpu.memory_space<vmem>>, vector<2x16x64xf32>
    %45 = vector.shape_cast %44 : vector<2x16x64xf32> to vector<32x64xf32>
    %c0_31 = arith.constant 0 : index
    %c0_32 = arith.constant 0 : index
    %46 = vector.load %arg8[%c0_31, %c0_32] : memref<64x256xf32, #tpu.memory_space<vmem>>, vector<64x256xf32>
    %cst_33 = arith.constant dense<0.000000e+00> : vector<32x256xf32>
    %47 = tpu.matmul %45, %46, %cst_33 {dimension_numbers = #tpu.dot_dimension_numbers<[1], [0], [0], [1], [0, 0, 1, 1], [], []>} : vector<32x64xf32>, vector<64x256xf32>, vector<32x256xf32> -> vector<32x256xf32>
    %48 = vector.broadcast %23 : vector<1x256xf32> to vector<32x256xf32>
    %49 = arith.addf %47, %48 : vector<32x256xf32>
    %50 = arith.addf %33, %49 : vector<32x256xf32>
    %51 = vector.shape_cast %50 : vector<32x256xf32> to vector<2x16x256xf32>
    %c0_34 = arith.constant 0 : index
    %c0_35 = arith.constant 0 : index
    %c0_36 = arith.constant 0 : index
    %52 = vector.load %arg9[%c0_34, %c0_35, %c0_36] : memref<2x16x512xf32, #tpu.memory_space<vmem>>, vector<2x16x256xf32>
    tpu.vector_store %arg9[%c0_34, %c0_35, %c0_36], %51 {strides = array<i32>} : memref<2x16x512xf32, #tpu.memory_space<vmem>>, vector<2x16x256xf32>,
    %53 = arith.addf %43, %49 : vector<32x256xf32>
    %54 = vector.shape_cast %53 : vector<32x256xf32> to vector<2x16x256xf32>
    %c0_37 = arith.constant 0 : index
    %c0_38 = arith.constant 0 : index
    %c256 = arith.constant 256 : index
    %55 = vector.load %arg9[%c0_37, %c0_38, %c256] : memref<2x16x512xf32, #tpu.memory_space<vmem>>, vector<2x16x256xf32>
    tpu.vector_store %arg9[%c0_37, %c0_38, %c256], %54 {strides = array<i32>} : memref<2x16x512xf32, #tpu.memory_space<vmem>>, vector<2x16x256xf32>,
    return
  }
  func.func @transform_0(%arg0: i32) -> (i32, i32, i32) {
    %c0_i32 = arith.constant 0 : i32
    %c0_i32_0 = arith.constant 0 : i32
    %c0_i32_1 = arith.constant 0 : i32
    return %arg0, %c0_i32, %c0_i32_0 : i32, i32, i32
  }
  func.func @transform_1(%arg0: i32) -> (i32, i32, i32) {
    %c0_i32 = arith.constant 0 : i32
    %c0_i32_0 = arith.constant 0 : i32
    %c0_i32_1 = arith.constant 0 : i32
    return %arg0, %c0_i32, %c0_i32_0 : i32, i32, i32
  }
  func.func @transform_2(%arg0: i32) -> (i32, i32) {
    %c0_i32 = arith.constant 0 : i32
    %c0_i32_0 = arith.constant 0 : i32
    %c0_i32_1 = arith.constant 0 : i32
    return %c0_i32, %c0_i32_0 : i32, i32
  }
  func.func @transform_3(%arg0: i32) -> (i32, i32) {
    %c0_i32 = arith.constant 0 : i32
    %c0_i32_0 = arith.constant 0 : i32
    %c0_i32_1 = arith.constant 0 : i32
    return %c0_i32, %c0_i32_0 : i32, i32
  }
  func.func @transform_4(%arg0: i32) -> (i32, i32) {
    %c0_i32 = arith.constant 0 : i32
    %c0_i32_0 = arith.constant 0 : i32
    %c0_i32_1 = arith.constant 0 : i32
    return %c0_i32, %c0_i32_0 : i32, i32
  }
  func.func @transform_5(%arg0: i32) -> (i32, i32) {
    %c0_i32 = arith.constant 0 : i32
    %c0_i32_0 = arith.constant 0 : i32
    %c0_i32_1 = arith.constant 0 : i32
    return %c0_i32, %c0_i32_0 : i32, i32
  }
  func.func @transform_6(%arg0: i32) -> (i32, i32) {
    %c0_i32 = arith.constant 0 : i32
    %c0_i32_0 = arith.constant 0 : i32
    %c0_i32_1 = arith.constant 0 : i32
    return %c0_i32, %c0_i32_0 : i32, i32
  }
  func.func @transform_7(%arg0: i32) -> (i32, i32) {
    %c0_i32 = arith.constant 0 : i32
    %c0_i32_0 = arith.constant 0 : i32
    %c0_i32_1 = arith.constant 0 : i32
    return %c0_i32, %c0_i32_0 : i32, i32
  }
  func.func @transform_8(%arg0: i32) -> (i32, i32, i32) {
    %c0_i32 = arith.constant 0 : i32
    %c0_i32_0 = arith.constant 0 : i32
    %c0_i32_1 = arith.constant 0 : i32
    return %arg0, %c0_i32, %c0_i32_0 : i32, i32, i32
  }
}

</mosaic_0001>

<llo_original>
// kernel: tile.38
$region0: #{tile.38}
  #allocation0 [shape = 's32[1]{0}', space=sflag, size = 0x4, scoped, tag = 'scoped memory for tile.38']
  %s0 = inlined_call_operand.vmem [shape: f32[4], index: 0, kind: input, shape index: {}]
  %s1 = inlined_call_operand.vmem [shape: f32[16,4], index: 1, kind: output, shape index: {}]
  // Predicated region
  $region2: #{tile.38} parent=0 // pred_check
    _
  $region3: #{tile.38} parent=0 // pred_check_branch
    %3 = sbr.rel (0) target = $region5
  $region4: #{tile.38} parent=0 // pred_region
    _
  $region5: #{tile.38} parent=0 // pred_fallthru
    _
  %v4 = vld [vmem:[%s0] ss:$0 sm:$0xff]
  %5 = vst [vmem:[%s1] sm:$0xff] %v4
  %s6 = scalar_lea.vmem %s1, 8
  %7 = vst [vmem:[%s6] sm:$0xff] %v4

// kernel: tile.43
$region0: #{tile.43}
  %s0 = inlined_call_operand.vmem [shape: f32[16,4], index: 0, kind: input, shape index: {}]
  %s1 = inlined_call_operand.vmem [shape: f32[1,64], index: 1, kind: output, shape index: {}]
  $region1: #{tile.43} parent=0
    #allocation0 [shape = 'u8[4096]{0}', space=vmem, size = 0x1000, scoped, tag = 'scoped mem for output reshape']
    %v2 = vld [vmem:[%s0] sm:$0x1]
    %vm3 = vcmask 31744
    %4 = vst.msk [vmem:[#allocation0] sm:$0x1] %vm3, %v2
    %s5 = scalar_lea.vmem %s0, 15
    %v6 = vld [vmem:[%s5] sm:$0x1]
    %7 = vrot.lane.b32.xlu0 %v6, 60
    %v8 = vpop.permute.xlu0 %7
    %vm9 = vcmask 523744
    %10 = vst.msk [vmem:[#allocation0] sm:$0x1] %vm9, %v8
    %s11 = scalar_lea.vmem %s0, 14
    %v12 = vld [vmem:[%s11] sm:$0x1]
    %13 = vrot.lane.b32.xlu0 %v12, 56
    %v14 = vpop.permute.xlu0 %13
    %vm15 = vcmask 490944
    %16 = vst.msk [vmem:[#allocation0] sm:$0x1] %vm15, %v14
    %s17 = scalar_lea.vmem %s0, 13
    %v18 = vld [vmem:[%s17] sm:$0x1]
    %19 = vrot.lane.b32.xlu0 %v18, 52
    %v20 = vpop.permute.xlu0 %19
    %vm21 = vcmask 458144
    %22 = vst.msk [vmem:[#allocation0] sm:$0x1] %vm21, %v20
    %s23 = scalar_lea.vmem %s0, 12
    %v24 = vld [vmem:[%s23] sm:$0x1]
    %25 = vrot.lane.b32.xlu0 %v24, 48
    %v26 = vpop.permute.xlu0 %25
    %vm27 = vcmask 425344
    %28 = vst.msk [vmem:[#allocation0] sm:$0x1] %vm27, %v26
    %s29 = scalar_lea.vmem %s0, 11
    %v30 = vld [vmem:[%s29] sm:$0x1]
    %31 = vrot.lane.b32.xlu0 %v30, 44
    %v32 = vpop.permute.xlu0 %31
    %vm33 = vcmask 392544
    %34 = vst.msk [vmem:[#allocation0] sm:$0x1] %vm33, %v32
    %s35 = scalar_lea.vmem %s0, 10
    %v36 = vld [vmem:[%s35] sm:$0x1]
    %37 = vrot.lane.b32.xlu0 %v36, 40
    %v38 = vpop.permute.xlu0 %37
    %vm39 = vcmask 359744
    %40 = vst.msk [vmem:[#allocation0] sm:$0x1] %vm39, %v38
    %s41 = scalar_lea.vmem %s0, 9
    %v42 = vld [vmem:[%s41] sm:$0x1]
    %43 = vrot.lane.b32.xlu0 %v42, 36
    %v44 = vpop.permute.xlu0 %43
    %vm45 = vcmask 326944
    %46 = vst.msk [vmem:[#allocation0] sm:$0x1] %vm45, %v44
    %s47 = scalar_lea.vmem %s0, 8
    %v48 = vld [vmem:[%s47] sm:$0x1]
    %49 = vrot.lane.b32.xlu0 %v48, 32
    %v50 = vpop.permute.xlu0 %49
    %vm51 = vcmask 294144
    %52 = vst.msk [vmem:[#allocation0] sm:$0x1] %vm51, %v50
    %s53 = scalar_lea.vmem %s0, 7
    %v54 = vld [vmem:[%s53] sm:$0x1]
    %55 = vrot.lane.b32.xlu0 %v54, 28
    %v56 = vpop.permute.xlu0 %55
    %vm57 = vcmask 261344
    %58 = vst.msk [vmem:[#allocation0] sm:$0x1] %vm57, %v56
    %s59 = scalar_lea.vmem %s0, 6
    %v60 = vld [vmem:[%s59] sm:$0x1]
    %61 = vrot.lane.b32.xlu0 %v60, 24
    %v62 = vpop.permute.xlu0 %61
    %vm63 = vcmask 228544
    %64 = vst.msk [vmem:[#allocation0] sm:$0x1] %vm63, %v62
    %s65 = scalar_lea.vmem %s0, 5
    %v66 = vld [vmem:[%s65] sm:$0x1]
    %67 = vrot.lane.b32.xlu0 %v66, 20
    %v68 = vpop.permute.xlu0 %67
    %vm69 = vcmask 195744
    %70 = vst.msk [vmem:[#allocation0] sm:$0x1] %vm69, %v68
    %s71 = scalar_lea.vmem %s0, 4
    %v72 = vld [vmem:[%s71] sm:$0x1]
    %73 = vrot.lane.b32.xlu0 %v72, 16
    %v74 = vpop.permute.xlu0 %73
    %vm75 = vcmask 162944
    %76 = vst.msk [vmem:[#allocation0] sm:$0x1] %vm75, %v74
    %s77 = scalar_lea.vmem %s0, 3
    %v78 = vld [vmem:[%s77] sm:$0x1]
    %79 = vrot.lane.b32.xlu0 %v78, 12
    %v80 = vpop.permute.xlu0 %79
    %vm81 = vcmask 130144
    %82 = vst.msk [vmem:[#allocation0] sm:$0x1] %vm81, %v80
    %s83 = scalar_lea.vmem %s0, 2
    %v84 = vld [vmem:[%s83] sm:$0x1]
    %85 = vrot.lane.b32.xlu0 %v84, 8
    %v86 = vpop.permute.xlu0 %85
    %vm87 = vcmask 97344
    %88 = vst.msk [vmem:[#allocation0] sm:$0x1] %vm87, %v86
    %s89 = scalar_lea.vmem %s0, 1
    %v90 = vld [vmem:[%s89] sm:$0x1]
    %91 = vrot.lane.b32.xlu0 %v90, 4
    %v92 = vpop.permute.xlu0 %91
    %vm93 = vcmask 64544
    %94 = vst.msk [vmem:[#allocation0] sm:$0x1] %vm93, %v92
    %s96 = ssub.s32 2, 1
    %v97 = vld [vmem:[#allocation0] sm:%s96]
    %s99 = ssub.s32 2, 1
    %100 = vst [vmem:[%s1] sm:%s99] %v97

// kernel: tile.48
$region0: #{tile.48}
  #allocation0 [shape = 's32[1]{0}', space=sflag, size = 0x4, scoped, tag = 'scoped memory for tile.48']
  %s0 = inlined_call_operand.vmem [shape: f32[8], index: 0, kind: input, shape index: {}]
  %s1 = inlined_call_operand.vmem [shape: f32[32,8], index: 1, kind: output, shape index: {}]
  // Predicated region
  $region2: #{tile.48} parent=0 // pred_check
    _
  $region3: #{tile.48} parent=0 // pred_check_branch
    %3 = sbr.rel (0) target = $region5
  $region4: #{tile.48} parent=0 // pred_region
    _
  $region5: #{tile.48} parent=0 // pred_fallthru
    _
  %v4 = vld [vmem:[%s0] ss:$0 sm:$0xff]
  %5 = vst [vmem:[%s1] sm:$0xff] %v4
  %s6 = scalar_lea.vmem %s1, 8
  %7 = vst [vmem:[%s6] sm:$0xff] %v4
  %s8 = scalar_lea.vmem %s1, 16
  %9 = vst [vmem:[%s8] sm:$0xff] %v4
  %s10 = scalar_lea.vmem %s1, 24
  %11 = vst [vmem:[%s10] sm:$0xff] %v4

// kernel: tile.49
$region0: #{tile.49}
  %s0 = inlined_call_operand.vmem [shape: f32[32,8], index: 0, kind: input, shape index: {}]
  %s1 = inlined_call_operand.vmem [shape: f32[1,256], index: 1, kind: output, shape index: {}]
  $region1: #{tile.49} parent=0
    #allocation0 [shape = 'u8[8192]{0}', space=vmem, size = 0x2000, scoped, tag = 'scoped mem for output reshape']
    %s2 = smov 3
    %v3 = vld [vmem:[%s0] ss:$16 sm:%s2]
    %vm4 = vcmask 64512
    %5 = vst.msk [vmem:[#allocation0] ss:$8 sm:$0x3] %vm4, %v3
    %s6 = scalar_lea.vmem %s0, 15
    %s7 = smov 3
    %v8 = vld [vmem:[%s6] ss:$16 sm:%s7]
    %9 = vrot.lane.b32.xlu0 %v8, 120
    %v10 = vpop.permute.xlu0 %9
    %vm11 = vcmask 1048512
    %12 = vst.msk [vmem:[#allocation0] ss:$8 sm:$0x3] %vm11, %v10
    %s13 = scalar_lea.vmem %s0, 14
    %s14 = smov 3
    %v15 = vld [vmem:[%s13] ss:$16 sm:%s14]
    %16 = vrot.lane.b32.xlu0 %v15, 112
    %v17 = vpop.permute.xlu0 %16
    %vm18 = vcmask 982912
    %19 = vst.msk [vmem:[#allocation0] ss:$8 sm:$0x3] %vm18, %v17
    %s20 = scalar_lea.vmem %s0, 13
    %s21 = smov 3
    %v22 = vld [vmem:[%s20] ss:$16 sm:%s21]
    %23 = vrot.lane.b32.xlu0 %v22, 104
    %v24 = vpop.permute.xlu0 %23
    %vm25 = vcmask 917312
    %26 = vst.msk [vmem:[#allocation0] ss:$8 sm:$0x3] %vm25, %v24
    %s27 = scalar_lea.vmem %s0, 12
    %s28 = smov 3
    %v29 = vld [vmem:[%s27] ss:$16 sm:%s28]
    %30 = vrot.lane.b32.xlu0 %v29, 96
    %v31 = vpop.permute.xlu0 %30
    %vm32 = vcmask 851712
    %33 = vst.msk [vmem:[#allocation0] ss:$8 sm:$0x3] %vm32, %v31
    %s34 = scalar_lea.vmem %s0, 11
    %s35 = smov 3
    %v36 = vld [vmem:[%s34] ss:$16 sm:%s35]
    %37 = vrot.lane.b32.xlu0 %v36, 88
    %v38 = vpop.permute.xlu0 %37
    %vm39 = vcmask 786112
    %40 = vst.msk [vmem:[#allocation0] ss:$8 sm:$0x3] %vm39, %v38
    %s41 = scalar_lea.vmem %s0, 10
    %s42 = smov 3
    %v43 = vld [vmem:[%s41] ss:$16 sm:%s42]
    %44 = vrot.lane.b32.xlu0 %v43, 80
    %v45 = vpop.permute.xlu0 %44
    %vm46 = vcmask 720512
    %47 = vst.msk [vmem:[#allocation0] ss:$8 sm:$0x3] %vm46, %v45
    %s48 = scalar_lea.vmem %s0, 9
    %s49 = smov 3
    %v50 = vld [vmem:[%s48] ss:$16 sm:%s49]
    %51 = vrot.lane.b32.xlu0 %v50, 72
    %v52 = vpop.permute.xlu0 %51
    %vm53 = vcmask 654912
    %54 = vst.msk [vmem:[#allocation0] ss:$8 sm:$0x3] %vm53, %v52
    %s55 = scalar_lea.vmem %s0, 8
    %s56 = smov 3
    %v57 = vld [vmem:[%s55] ss:$16 sm:%s56]
    %58 = vrot.lane.b32.xlu0 %v57, 64
    %v59 = vpop.permute.xlu0 %58
    %vm60 = vcmask 589312
    %61 = vst.msk [vmem:[#allocation0] ss:$8 sm:$0x3] %vm60, %v59
    %s62 = scalar_lea.vmem %s0, 7
    %s63 = smov 3
    %v64 = vld [vmem:[%s62] ss:$16 sm:%s63]
    %65 = vrot.lane.b32.xlu0 %v64, 56
    %v66 = vpop.permute.xlu0 %65
    %vm67 = vcmask 523712
    %68 = vst.msk [vmem:[#allocation0] ss:$8 sm:$0x3] %vm67, %v66
    %s69 = scalar_lea.vmem %s0, 6
    %s70 = smov 3
    %v71 = vld [vmem:[%s69] ss:$16 sm:%s70]
    %72 = vrot.lane.b32.xlu0 %v71, 48
    %v73 = vpop.permute.xlu0 %72
    %vm74 = vcmask 458112
    %75 = vst.msk [vmem:[#allocation0] ss:$8 sm:$0x3] %vm74, %v73
    %s76 = scalar_lea.vmem %s0, 5
    %s77 = smov 3
    %v78 = vld [vmem:[%s76] ss:$16 sm:%s77]
    %79 = vrot.lane.b32.xlu0 %v78, 40
    %v80 = vpop.permute.xlu0 %79
    %vm81 = vcmask 392512
    %82 = vst.msk [vmem:[#allocation0] ss:$8 sm:$0x3] %vm81, %v80
    %s83 = scalar_lea.vmem %s0, 4
    %s84 = smov 3
    %v85 = vld [vmem:[%s83] ss:$16 sm:%s84]
    %86 = vrot.lane.b32.xlu0 %v85, 32
    %v87 = vpop.permute.xlu0 %86
    %vm88 = vcmask 326912
    %89 = vst.msk [vmem:[#allocation0] ss:$8 sm:$0x3] %vm88, %v87
    %s90 = scalar_lea.vmem %s0, 3
    %s91 = smov 3
    %v92 = vld [vmem:[%s90] ss:$16 sm:%s91]
    %93 = vrot.lane.b32.xlu0 %v92, 24
    %v94 = vpop.permute.xlu0 %93
    %vm95 = vcmask 261312
    %96 = vst.msk [vmem:[#allocation0] ss:$8 sm:$0x3] %vm95, %v94
    %s97 = scalar_lea.vmem %s0, 2
    %s98 = smov 3
    %v99 = vld [vmem:[%s97] ss:$16 sm:%s98]
    %100 = vrot.lane.b32.xlu0 %v99, 16
    %v101 = vpop.permute.xlu0 %100
    %vm102 = vcmask 195712
    %103 = vst.msk [vmem:[#allocation0] ss:$8 sm:$0x3] %vm102, %v101
    %s104 = scalar_lea.vmem %s0, 1
    %s105 = smov 3
    %v106 = vld [vmem:[%s104] ss:$16 sm:%s105]
    %107 = vrot.lane.b32.xlu0 %v106, 8
    %v108 = vpop.permute.xlu0 %107
    %vm109 = vcmask 130112
    %110 = vst.msk [vmem:[#allocation0] ss:$8 sm:$0x3] %vm109, %v108
    %s112 = ssub.s32 2, 1
    %v113 = vld [vmem:[#allocation0] sm:%s112]
    %s115 = ssub.s32 2, 1
    %116 = vst [vmem:[%s1] sm:%s115] %v113
    %s117 = scalar_lea.vmem [#allocation0], 8
    %v118 = vld [vmem:[%s117] sm:%s112]
    %s120 = ssub.s32 2, 1
    %s121 = scalar_lea.vmem %s1, 1
    %122 = vst [vmem:[%s121] sm:%s120] %v118

// kernel: squeeze.29
$region0: #{squeeze.29}
  %s0 = inlined_call_operand.vmem [shape: f32[256], index: 0, kind: input, shape index: {}]
  %s1 = inlined_call_operand.vmem [shape: f32[32,8], index: 1, kind: output, shape index: {}]
  $region1: #{squeeze.29} parent=0
    #allocation0 [shape = 'u8[4096]{0}', space=vmem, size = 0x1000, scoped, tag = 'scoped mem for input reshape']
    %s3 = ssub.s32 4, 1
    %v4 = vld [vmem:[%s0] sm:%s3]
    %5 = vst [vmem:[#allocation0] sm:%s3] %v4
    %v6 = vld [vmem:[#allocation0] sm:$0x3]
    %vm7 = vcmask 64512
    %8 = vst.msk [vmem:[%s1] ss:$16 sm:$0x3] %vm7, %v6
    %v9 = vld [vmem:[#allocation0] sm:$0x3]
    %10 = vrot.lane.b32.xlu0 %v9, 120
    %v11 = vpop.permute.xlu0 %10
    %vm12 = vcmask 64512
    %s13 = scalar_lea.vmem %s1, 1
    %14 = vst.msk [vmem:[%s13] ss:$16 sm:$0x3] %vm12, %v11
    %v15 = vld [vmem:[#allocation0] sm:$0x3]
    %16 = vrot.lane.b32.xlu0 %v15, 112
    %v17 = vpop.permute.xlu0 %16
    %vm18 = vcmask 64512
    %s19 = scalar_lea.vmem %s1, 2
    %20 = vst.msk [vmem:[%s19] ss:$16 sm:$0x3] %vm18, %v17
    %v21 = vld [vmem:[#allocation0] sm:$0x3]
    %22 = vrot.lane.b32.xlu0 %v21, 104
    %v23 = vpop.permute.xlu0 %22
    %vm24 = vcmask 64512
    %s25 = scalar_lea.vmem %s1, 3
    %26 = vst.msk [vmem:[%s25] ss:$16 sm:$0x3] %vm24, %v23
    %v27 = vld [vmem:[#allocation0] sm:$0x3]
    %28 = vrot.lane.b32.xlu0 %v27, 96
    %v29 = vpop.permute.xlu0 %28
    %vm30 = vcmask 64512
    %s31 = scalar_lea.vmem %s1, 4
    %32 = vst.msk [vmem:[%s31] ss:$16 sm:$0x3] %vm30, %v29
    %v33 = vld [vmem:[#allocation0] sm:$0x3]
    %34 = vrot.lane.b32.xlu0 %v33, 88
    %v35 = vpop.permute.xlu0 %34
    %vm36 = vcmask 64512
    %s37 = scalar_lea.vmem %s1, 5
    %38 = vst.msk [vmem:[%s37] ss:$16 sm:$0x3] %vm36, %v35
    %v39 = vld [vmem:[#allocation0] sm:$0x3]
    %40 = vrot.lane.b32.xlu0 %v39, 80
    %v41 = vpop.permute.xlu0 %40
    %vm42 = vcmask 64512
    %s43 = scalar_lea.vmem %s1, 6
    %44 = vst.msk [vmem:[%s43] ss:$16 sm:$0x3] %vm42, %v41
    %v45 = vld [vmem:[#allocation0] sm:$0x3]
    %46 = vrot.lane.b32.xlu0 %v45, 72
    %v47 = vpop.permute.xlu0 %46
    %vm48 = vcmask 64512
    %s49 = scalar_lea.vmem %s1, 7
    %50 = vst.msk [vmem:[%s49] ss:$16 sm:$0x3] %vm48, %v47
    %v51 = vld [vmem:[#allocation0] sm:$0x3]
    %52 = vrot.lane.b32.xlu0 %v51, 64
    %v53 = vpop.permute.xlu0 %52
    %vm54 = vcmask 64512
    %s55 = scalar_lea.vmem %s1, 8
    %56 = vst.msk [vmem:[%s55] ss:$16 sm:$0x3] %vm54, %v53
    %v57 = vld [vmem:[#allocation0] sm:$0x3]
    %58 = vrot.lane.b32.xlu0 %v57, 56
    %v59 = vpop.permute.xlu0 %58
    %vm60 = vcmask 64512
    %s61 = scalar_lea.vmem %s1, 9
    %62 = vst.msk [vmem:[%s61] ss:$16 sm:$0x3] %vm60, %v59
    %v63 = vld [vmem:[#allocation0] sm:$0x3]
    %64 = vrot.lane.b32.xlu0 %v63, 48
    %v65 = vpop.permute.xlu0 %64
    %vm66 = vcmask 64512
    %s67 = scalar_lea.vmem %s1, 10
    %68 = vst.msk [vmem:[%s67] ss:$16 sm:$0x3] %vm66, %v65
    %v69 = vld [vmem:[#allocation0] sm:$0x3]
    %70 = vrot.lane.b32.xlu0 %v69, 40
    %v71 = vpop.permute.xlu0 %70
    %vm72 = vcmask 64512
    %s73 = scalar_lea.vmem %s1, 11
    %74 = vst.msk [vmem:[%s73] ss:$16 sm:$0x3] %vm72, %v71
    %v75 = vld [vmem:[#allocation0] sm:$0x3]
    %76 = vrot.lane.b32.xlu0 %v75, 32
    %v77 = vpop.permute.xlu0 %76
    %vm78 = vcmask 64512
    %s79 = scalar_lea.vmem %s1, 12
    %80 = vst.msk [vmem:[%s79] ss:$16 sm:$0x3] %vm78, %v77
    %v81 = vld [vmem:[#allocation0] sm:$0x3]
    %82 = vrot.lane.b32.xlu0 %v81, 24
    %v83 = vpop.permute.xlu0 %82
    %vm84 = vcmask 64512
    %s85 = scalar_lea.vmem %s1, 13
    %86 = vst.msk [vmem:[%s85] ss:$16 sm:$0x3] %vm84, %v83
    %v87 = vld [vmem:[#allocation0] sm:$0x3]
    %88 = vrot.lane.b32.xlu0 %v87, 16
    %v89 = vpop.permute.xlu0 %88
    %vm90 = vcmask 64512
    %s91 = scalar_lea.vmem %s1, 14
    %92 = vst.msk [vmem:[%s91] ss:$16 sm:$0x3] %vm90, %v89
    %v93 = vld [vmem:[#allocation0] sm:$0x3]
    %94 = vrot.lane.b32.xlu0 %v93, 8
    %v95 = vpop.permute.xlu0 %94
    %vm96 = vcmask 64512
    %s97 = scalar_lea.vmem %s1, 15
    %98 = vst.msk [vmem:[%s97] ss:$16 sm:$0x3] %vm96, %v95

// kernel: tile.53
$region0: #{tile.53}
  #allocation0 [shape = 's32[1]{0}', space=sflag, size = 0x4, scoped, tag = 'scoped memory for tile.53']
  %s0 = inlined_call_operand.vmem [shape: f32[8], index: 0, kind: input, shape index: {}]
  %s1 = inlined_call_operand.vmem [shape: f32[64,8], index: 1, kind: output, shape index: {}]
  // Predicated region
  $region2: #{tile.53} parent=0 // pred_check
    _
  $region3: #{tile.53} parent=0 // pred_check_branch
    %3 = sbr.rel (0) target = $region5
  $region4: #{tile.53} parent=0 // pred_region
    _
  $region5: #{tile.53} parent=0 // pred_fallthru
    _
  %v4 = vld [vmem:[%s0] ss:$0 sm:$0xff]
  %5 = vst [vmem:[%s1] sm:$0xff] %v4
  %s6 = scalar_lea.vmem %s1, 8
  %7 = vst [vmem:[%s6] sm:$0xff] %v4
  %s8 = scalar_lea.vmem %s1, 16
  %9 = vst [vmem:[%s8] sm:$0xff] %v4
  %s10 = scalar_lea.vmem %s1, 24
  %11 = vst [vmem:[%s10] sm:$0xff] %v4
  %s12 = scalar_lea.vmem %s1, 32
  %13 = vst [vmem:[%s12] sm:$0xff] %v4
  %s14 = scalar_lea.vmem %s1, 40
  %15 = vst [vmem:[%s14] sm:$0xff] %v4
  %s16 = scalar_lea.vmem %s1, 48
  %17 = vst [vmem:[%s16] sm:$0xff] %v4
  %s18 = scalar_lea.vmem %s1, 56
  %19 = vst [vmem:[%s18] sm:$0xff] %v4

// kernel: tile.58
$region0: #{tile.58}
  %s0 = inlined_call_operand.vmem [shape: f32[64,8], index: 0, kind: input, shape index: {}]
  %s1 = inlined_call_operand.vmem [shape: f32[1,512], index: 1, kind: output, shape index: {}]
  $region1: #{tile.58} parent=0
    #allocation0 [shape = 'u8[16384]{0}', space=vmem, size = 0x4000, scoped, tag = 'scoped mem for output reshape']
    %s2 = smov 3
    %v3 = vld [vmem:[%s0] ss:$16 sm:%s2]
    %s4 = smov 12
    %v5 = vld [vmem:[%s0] ss:$16 sm:%s4]
    %vm6 = vcmask 1043458
    %v7 = vsel %vm6, %v5, %v3
    %vm8 = vcmask 64512
    %9 = vst.msk [vmem:[#allocation0] ss:$8 sm:$0xf] %vm8, %v7
    %s10 = scalar_lea.vmem %s0, 15
    %s11 = smov 3
    %v12 = vld [vmem:[%s10] ss:$16 sm:%s11]
    %s13 = scalar_lea.vmem %s0, 15
    %s14 = smov 12
    %v15 = vld [vmem:[%s13] ss:$16 sm:%s14]
    %vm16 = vcmask 1043458
    %v17 = vsel %vm16, %v15, %v12
    %18 = vrot.lane.b32.xlu0 %v17, 120
    %v19 = vpop.permute.xlu0 %18
    %vm20 = vcmask 1048512
    %21 = vst.msk [vmem:[#allocation0] ss:$8 sm:$0xf] %vm20, %v19
    %s22 = scalar_lea.vmem %s0, 14
    %s23 = smov 3
    %v24 = vld [vmem:[%s22] ss:$16 sm:%s23]
    %s25 = scalar_lea.vmem %s0, 14
    %s26 = smov 12
    %v27 = vld [vmem:[%s25] ss:$16 sm:%s26]
    %vm28 = vcmask 1043458
    %v29 = vsel %vm28, %v27, %v24
    %30 = vrot.lane.b32.xlu0 %v29, 112
    %v31 = vpop.permute.xlu0 %30
    %vm32 = vcmask 982912
    %33 = vst.msk [vmem:[#allocation0] ss:$8 sm:$0xf] %vm32, %v31
    %s34 = scalar_lea.vmem %s0, 13
    %s35 = smov 3
    %v36 = vld [vmem:[%s34] ss:$16 sm:%s35]
    %s37 = scalar_lea.vmem %s0, 13
    %s38 = smov 12
    %v39 = vld [vmem:[%s37] ss:$16 sm:%s38]
    %vm40 = vcmask 1043458
    %v41 = vsel %vm40, %v39, %v36
    %42 = vrot.lane.b32.xlu0 %v41, 104
    %v43 = vpop.permute.xlu0 %42
    %vm44 = vcmask 917312
    %45 = vst.msk [vmem:[#allocation0] ss:$8 sm:$0xf] %vm44, %v43
    %s46 = scalar_lea.vmem %s0, 12
    %s47 = smov 3
    %v48 = vld [vmem:[%s46] ss:$16 sm:%s47]
    %s49 = scalar_lea.vmem %s0, 12
    %s50 = smov 12
    %v51 = vld [vmem:[%s49] ss:$16 sm:%s50]
    %vm52 = vcmask 1043458
    %v53 = vsel %vm52, %v51, %v48
    %54 = vrot.lane.b32.xlu0 %v53, 96
    %v55 = vpop.permute.xlu0 %54
    %vm56 = vcmask 851712
    %57 = vst.msk [vmem:[#allocation0] ss:$8 sm:$0xf] %vm56, %v55
    %s58 = scalar_lea.vmem %s0, 11
    %s59 = smov 3
    %v60 = vld [vmem:[%s58] ss:$16 sm:%s59]
    %s61 = scalar_lea.vmem %s0, 11
    %s62 = smov 12
    %v63 = vld [vmem:[%s61] ss:$16 sm:%s62]
    %vm64 = vcmask 1043458
    %v65 = vsel %vm64, %v63, %v60
    %66 = vrot.lane.b32.xlu0 %v65, 88
    %v67 = vpop.permute.xlu0 %66
    %vm68 = vcmask 786112
    %69 = vst.msk [vmem:[#allocation0] ss:$8 sm:$0xf] %vm68, %v67
    %s70 = scalar_lea.vmem %s0, 10
    %s71 = smov 3
    %v72 = vld [vmem:[%s70] ss:$16 sm:%s71]
    %s73 = scalar_lea.vmem %s0, 10
    %s74 = smov 12
    %v75 = vld [vmem:[%s73] ss:$16 sm:%s74]
    %vm76 = vcmask 1043458
    %v77 = vsel %vm76, %v75, %v72
    %78 = vrot.lane.b32.xlu0 %v77, 80
    %v79 = vpop.permute.xlu0 %78
    %vm80 = vcmask 720512
    %81 = vst.msk [vmem:[#allocation0] ss:$8 sm:$0xf] %vm80, %v79
    %s82 = scalar_lea.vmem %s0, 9
    %s83 = smov 3
    %v84 = vld [vmem:[%s82] ss:$16 sm:%s83]
    %s85 = scalar_lea.vmem %s0, 9
    %s86 = smov 12
    %v87 = vld [vmem:[%s85] ss:$16 sm:%s86]
    %vm88 = vcmask 1043458
    %v89 = vsel %vm88, %v87, %v84
    %90 = vrot.lane.b32.xlu0 %v89, 72
    %v91 = vpop.permute.xlu0 %90
    %vm92 = vcmask 654912
    %93 = vst.msk [vmem:[#allocation0] ss:$8 sm:$0xf] %vm92, %v91
    %s94 = scalar_lea.vmem %s0, 8
    %s95 = smov 3
    %v96 = vld [vmem:[%s94] ss:$16 sm:%s95]
    %s97 = scalar_lea.vmem %s0, 8
    %s98 = smov 12
    %v99 = vld [vmem:[%s97] ss:$16 sm:%s98]
    %vm100 = vcmask 1043458
    %v101 = vsel %vm100, %v99, %v96
    %102 = vrot.lane.b32.xlu0 %v101, 64
    %v103 = vpop.permute.xlu0 %102
    %vm104 = vcmask 589312
    %105 = vst.msk [vmem:[#allocation0] ss:$8 sm:$0xf] %vm104, %v103
    %s106 = scalar_lea.vmem %s0, 7
    %s107 = smov 3
    %v108 = vld [vmem:[%s106] ss:$16 sm:%s107]
    %s109 = scalar_lea.vmem %s0, 7
    %s110 = smov 12
    %v111 = vld [vmem:[%s109] ss:$16 sm:%s110]
    %vm112 = vcmask 1043458
    %v113 = vsel %vm112, %v111, %v108
    %114 = vrot.lane.b32.xlu0 %v113, 56
    %v115 = vpop.permute.xlu0 %114
    %vm116 = vcmask 523712
    %117 = vst.msk [vmem:[#allocation0] ss:$8 sm:$0xf] %vm116, %v115
    %s118 = scalar_lea.vmem %s0, 6
    %s119 = smov 3
    %v120 = vld [vmem:[%s118] ss:$16 sm:%s119]
    %s121 = scalar_lea.vmem %s0, 6
    %s122 = smov 12
    %v123 = vld [vmem:[%s121] ss:$16 sm:%s122]
    %vm124 = vcmask 1043458
    %v125 = vsel %vm124, %v123, %v120
    %126 = vrot.lane.b32.xlu0 %v125, 48
    %v127 = vpop.permute.xlu0 %126
    %vm128 = vcmask 458112
    %129 = vst.msk [vmem:[#allocation0] ss:$8 sm:$0xf] %vm128, %v127
    %s130 = scalar_lea.vmem %s0, 5
    %s131 = smov 3
    %v132 = vld [vmem:[%s130] ss:$16 sm:%s131]
    %s133 = scalar_lea.vmem %s0, 5
    %s134 = smov 12
    %v135 = vld [vmem:[%s133] ss:$16 sm:%s134]
    %vm136 = vcmask 1043458
    %v137 = vsel %vm136, %v135, %v132
    %138 = vrot.lane.b32.xlu0 %v137, 40
    %v139 = vpop.permute.xlu0 %138
    %vm140 = vcmask 392512
    %141 = vst.msk [vmem:[#allocation0] ss:$8 sm:$0xf] %vm140, %v139
    %s142 = scalar_lea.vmem %s0, 4
    %s143 = smov 3
    %v144 = vld [vmem:[%s142] ss:$16 sm:%s143]
    %s145 = scalar_lea.vmem %s0, 4
    %s146 = smov 12
    %v147 = vld [vmem:[%s145] ss:$16 sm:%s146]
    %vm148 = vcmask 1043458
    %v149 = vsel %vm148, %v147, %v144
    %150 = vrot.lane.b32.xlu0 %v149, 32
    %v151 = vpop.permute.xlu0 %150
    %vm152 = vcmask 326912
    %153 = vst.msk [vmem:[#allocation0] ss:$8 sm:$0xf] %vm152, %v151
    %s154 = scalar_lea.vmem %s0, 3
    %s155 = smov 3
    %v156 = vld [vmem:[%s154] ss:$16 sm:%s155]
    %s157 = scalar_lea.vmem %s0, 3
    %s158 = smov 12
    %v159 = vld [vmem:[%s157] ss:$16 sm:%s158]
    %vm160 = vcmask 1043458
    %v161 = vsel %vm160, %v159, %v156
    %162 = vrot.lane.b32.xlu0 %v161, 24
    %v163 = vpop.permute.xlu0 %162
    %vm164 = vcmask 261312
    %165 = vst.msk [vmem:[#allocation0] ss:$8 sm:$0xf] %vm164, %v163
    %s166 = scalar_lea.vmem %s0, 2
    %s167 = smov 3
    %v168 = vld [vmem:[%s166] ss:$16 sm:%s167]
    %s169 = scalar_lea.vmem %s0, 2
    %s170 = smov 12
    %v171 = vld [vmem:[%s169] ss:$16 sm:%s170]
    %vm172 = vcmask 1043458
    %v173 = vsel %vm172, %v171, %v168
    %174 = vrot.lane.b32.xlu0 %v173, 16
    %v175 = vpop.permute.xlu0 %174
    %vm176 = vcmask 195712
    %177 = vst.msk [vmem:[#allocation0] ss:$8 sm:$0xf] %vm176, %v175
    %s178 = scalar_lea.vmem %s0, 1
    %s179 = smov 3
    %v180 = vld [vmem:[%s178] ss:$16 sm:%s179]
    %s181 = scalar_lea.vmem %s0, 1
    %s182 = smov 12
    %v183 = vld [vmem:[%s181] ss:$16 sm:%s182]
    %vm184 = vcmask 1043458
    %v185 = vsel %vm184, %v183, %v180
    %186 = vrot.lane.b32.xlu0 %v185, 8
    %v187 = vpop.permute.xlu0 %186
    %vm188 = vcmask 130112
    %189 = vst.msk [vmem:[#allocation0] ss:$8 sm:$0xf] %vm188, %v187
    %s191 = ssub.s32 2, 1
    %v192 = vld [vmem:[#allocation0] sm:%s191]
    %s194 = ssub.s32 2, 1
    %195 = vst [vmem:[%s1] sm:%s194] %v192
    %s196 = scalar_lea.vmem [#allocation0], 8
    %v197 = vld [vmem:[%s196] sm:%s191]
    %s199 = ssub.s32 2, 1
    %s200 = scalar_lea.vmem %s1, 1
    %201 = vst [vmem:[%s200] sm:%s199] %v197
    %s202 = scalar_lea.vmem [#allocation0], 16
    %v203 = vld [vmem:[%s202] sm:%s191]
    %s205 = ssub.s32 2, 1
    %s206 = scalar_lea.vmem %s1, 2
    %207 = vst [vmem:[%s206] sm:%s205] %v203
    %s208 = scalar_lea.vmem [#allocation0], 24
    %v209 = vld [vmem:[%s208] sm:%s191]
    %s211 = ssub.s32 2, 1
    %s212 = scalar_lea.vmem %s1, 3
    %213 = vst [vmem:[%s212] sm:%s211] %v209

// kernel: res_gen_block.2
$region0: #{res_gen_block.2}
  #allocation0 [shape = 'u32[]', space=smem, size = 0x4, offset = 0x4, fixed_abs, tag = 'smem constant byte address 0x4 - core index']
  #allocation1 [shape = 'u32[72,128]{1,0:T(1,128)}', space=vmem, size = 0x9000, scoped, tag = 'internal scratch']
  %s0 = inlined_call_operand.vmem [shape: f32[2,16,64], index: 0, kind: input, shape index: {}]
  %s1 = inlined_call_operand.vmem [shape: f32[2,64], index: 1, kind: input, shape index: {}]
  %s2 = inlined_call_operand.vmem [shape: f32[64,256], index: 2, kind: input, shape index: {}]
  %s3 = inlined_call_operand.vmem [shape: f32[64,256], index: 3, kind: input, shape index: {}]
  %s4 = inlined_call_operand.vmem [shape: f32[64,256], index: 4, kind: input, shape index: {}]
  %s5 = inlined_call_operand.vmem [shape: f32[64,256], index: 5, kind: input, shape index: {}]
  %s6 = inlined_call_operand.vmem [shape: f32[1,256], index: 6, kind: input, shape index: {}]
  %s7 = inlined_call_operand.vmem [shape: bf16[2,16,512], index: 7, kind: output, shape index: {0}]
  %s8 = inlined_call_operand.vmem [shape: f32[1,2,256], index: 8, kind: output, shape index: {1}]
  %9 = xla_tuple %s7, %s8
  %s10 = sld [smem:[#allocation0]]
  $region46: #{res_gen_block.2} parent=0
    _
  %s12 = ssub.s32 1, %s10
  %s13 = scalar_select 0, %s12, %s10
  // Predicated region
  $region2: #{res_gen_block.2} parent=0 // pred_check
    _
  $region3: #{res_gen_block.2} parent=0 // pred_check_branch
    %15 = sbr.rel (0) target = $region5
  $region4: #{res_gen_block.2} parent=0 // pred_region
    _
  $region5: #{res_gen_block.2} parent=0 // pred_fallthru
    _
  // Predicated region
  $region6: #{res_gen_block.2} parent=0 // pred_check
    _
  $region7: #{res_gen_block.2} parent=0 // pred_check_branch
    %17 = sbr.rel (0) target = $region9
  $region8: #{res_gen_block.2} parent=0 // pred_region
    _
  $region9: #{res_gen_block.2} parent=0 // pred_fallthru
    _
  // Predicated region
  $region10: #{res_gen_block.2} parent=0 // pred_check
    _
  $region11: #{res_gen_block.2} parent=0 // pred_check_branch
    %19 = sbr.rel (0) target = $region13
  $region12: #{res_gen_block.2} parent=0 // pred_region
    _
  $region13: #{res_gen_block.2} parent=0 // pred_fallthru
    _
  // Predicated region
  $region14: #{res_gen_block.2} parent=0 // pred_check
    _
  $region15: #{res_gen_block.2} parent=0 // pred_check_branch
    %21 = sbr.rel (0) target = $region17
  $region16: #{res_gen_block.2} parent=0 // pred_region
    _
  $region17: #{res_gen_block.2} parent=0 // pred_fallthru
    _
  // Predicated region
  $region18: #{res_gen_block.2} parent=0 // pred_check
    _
  $region19: #{res_gen_block.2} parent=0 // pred_check_branch
    %23 = sbr.rel (0) target = $region21
  $region20: #{res_gen_block.2} parent=0 // pred_region
    _
  $region21: #{res_gen_block.2} parent=0 // pred_fallthru
    _
  // Predicated region
  $region22: #{res_gen_block.2} parent=0 // pred_check
    _
  $region23: #{res_gen_block.2} parent=0 // pred_check_branch
    %25 = sbr.rel (0) target = $region25
  $region24: #{res_gen_block.2} parent=0 // pred_region
    _
  $region25: #{res_gen_block.2} parent=0 // pred_fallthru
    _
  // Predicated region
  $region26: #{res_gen_block.2} parent=0 // pred_check
    _
  $region27: #{res_gen_block.2} parent=0 // pred_check_branch
    %27 = sbr.rel (0) target = $region29
  $region28: #{res_gen_block.2} parent=0 // pred_region
    _
  $region29: #{res_gen_block.2} parent=0 // pred_fallthru
    _
  %v28 = vld [vmem:[%s0] sm:$0xff]
  %v29 = vld [vmem:[%s0 + $0x8] sm:$0xff]
  %v30 = vld [vmem:[%s0 + $0x10] sm:$0xff]
  %v31 = vld [vmem:[%s0 + $0x18] sm:$0xff]
  %v32 = vld [vmem:[%s1] sm:$0x1]
  %v33 = vperm.slane %v32, 0
  %v34 = vmul.f32 %v28, %v33
  %v35 = vmul.f32 %v29, %v33
  %v36 = vmul.f32 %v30, %v33
  %v37 = vmul.f32 %v31, %v33
  %v38 = vld [vmem:[%s1 + $0x1] sm:$0x1]
  %v39 = vperm.slane %v38, 0
  %v40 = vadd.f32 %v34, %v39
  %v41 = vadd.f32 %v35, %v39
  %v42 = vadd.f32 %v36, %v39
  %v43 = vadd.f32 %v37, %v39
  %v44 = vmax.f32 %v40, 0.0
  %v45 = vmax.f32 %v41, 0.0
  %v46 = vmax.f32 %v42, 0.0
  %v47 = vmax.f32 %v43, 0.0
  %vm52 = vcmask 1040384
  %v53 = vrot.slane %v44, 7
  %v54 = vrot.slane %v45, 7
  %v55 = vsel %vm52, %v53, %v54
  %v56 = vrot.slane %v46, 7
  %v57 = vrot.slane %v47, 7
  %v58 = vsel %vm52, %v56, %v57
  %v61 = vsel %vm52, 0.0, %v53
  %v62 = vsel %vm52, 0.0, %v56
  %vm63 = vcmask 1046528
  %v64 = vrot.slane %v44, 1
  %v65 = vrot.slane %v45, 1
  %v66 = vsel %vm63, %v64, %v65
  %v67 = vrot.slane %v46, 1
  %v68 = vrot.slane %v47, 1
  %v69 = vsel %vm63, %v67, %v68
  %v72 = vsel %vm63, %v65, 0.0
  %v73 = vsel %vm63, %v68, 0.0
  %v74 = vld [vmem:[%s6] sm:$0x3]
  %v75 = vld [vmem:[%s2] sm:$0xff]
  %v76 = vld [vmem:[%s2 + $0x8] sm:$0xff]
  %v77 = vld [vmem:[%s2 + $0x10] sm:$0xff]
  %v78 = vld [vmem:[%s2 + $0x18] sm:$0xff]
  %v79 = vld [vmem:[%s2 + $0x20] sm:$0xff]
  %v80 = vld [vmem:[%s2 + $0x28] sm:$0xff]
  %v81 = vld [vmem:[%s2 + $0x30] sm:$0xff]
  %v82 = vld [vmem:[%s2 + $0x38] sm:$0xff]
  %v83 = vld [vmem:[%s2 + $0x40] sm:$0xff]
  %v84 = vld [vmem:[%s2 + $0x48] sm:$0xff]
  %v85 = vld [vmem:[%s2 + $0x50] sm:$0xff]
  %v86 = vld [vmem:[%s2 + $0x58] sm:$0xff]
  %v87 = vld [vmem:[%s2 + $0x60] sm:$0xff]
  %v88 = vld [vmem:[%s2 + $0x68] sm:$0xff]
  %v89 = vld [vmem:[%s2 + $0x70] sm:$0xff]
  %v90 = vld [vmem:[%s2 + $0x78] sm:$0xff]
  %v91 = vld [vmem:[%s3] sm:$0xff]
  %v92 = vld [vmem:[%s3 + $0x8] sm:$0xff]
  %v93 = vld [vmem:[%s3 + $0x10] sm:$0xff]
  %v94 = vld [vmem:[%s3 + $0x18] sm:$0xff]
  %v95 = vld [vmem:[%s3 + $0x20] sm:$0xff]
  %v96 = vld [vmem:[%s3 + $0x28] sm:$0xff]
  %v97 = vld [vmem:[%s3 + $0x30] sm:$0xff]
  %v98 = vld [vmem:[%s3 + $0x38] sm:$0xff]
  %v99 = vld [vmem:[%s3 + $0x40] sm:$0xff]
  %v100 = vld [vmem:[%s3 + $0x48] sm:$0xff]
  %v101 = vld [vmem:[%s3 + $0x50] sm:$0xff]
  %v102 = vld [vmem:[%s3 + $0x58] sm:$0xff]
  %v103 = vld [vmem:[%s3 + $0x60] sm:$0xff]
  %v104 = vld [vmem:[%s3 + $0x68] sm:$0xff]
  %v105 = vld [vmem:[%s3 + $0x70] sm:$0xff]
  %v106 = vld [vmem:[%s3 + $0x78] sm:$0xff]
  %vm107 = vcmask 523264
  %v108 = vsel %vm107, %v44, 0
  %v110 = vsel %vm107, %v45, 0
  %v112 = vsel %vm107, %v46, 0
  %v114 = vsel %vm107, %v47, 0
  %116 = vmatpush.msra.mxu0 0.0
  %117 = vmatpush.msra.mxu0 0.0
  %118 = vmatpush.msra.mxu0 0.0
  %119 = vmatpush.msra.mxu0 0.0
  %120 = vmatpush.msra.mxu0 0.0
  %121 = vmatpush.msra.mxu0 0.0
  %122 = vmatpush.msra.mxu0 0.0
  %123 = vmatpush.msra.mxu0 0.0
  %124 = vmatpush.msra.mxu0 %v105
  %125 = vmatpush.msra.mxu0 %v103
  %126 = vmatpush.msra.mxu0 %v101
  %127 = vmatpush.msra.mxu0 %v99
  %128 = vmatpush.msra.mxu0 %v97
  %129 = vmatpush.msra.mxu0 %v95
  %130 = vmatpush.msra.mxu0 %v93
  %131 = vmatpush.msra.mxu0 %v91
  %132 = vmatmul.f32.gmra.mxu0 %v108
  %v133 = vpop.f32.mrf.mxu0
  %v134 = vadd.f32 0.0, %v133
  %135 = vmatmul.f32.gmra.mxu0 %v110
  %v136 = vpop.f32.mrf.mxu0
  %v137 = vadd.f32 0.0, %v136
  %138 = vmatmul.f32.gmra.mxu0 %v112
  %v139 = vpop.f32.mrf.mxu0
  %v140 = vadd.f32 0.0, %v139
  %141 = vmatmul.f32.gmra.mxu0 %v114
  %v142 = vpop.f32.mrf.mxu0
  %v143 = vadd.f32 0.0, %v142
  %144 = vdwg.mxu0
  %145 = vmatpush.msra.mxu0 0.0
  %146 = vmatpush.msra.mxu0 0.0
  %147 = vmatpush.msra.mxu0 0.0
  %148 = vmatpush.msra.mxu0 0.0
  %149 = vmatpush.msra.mxu0 0.0
  %150 = vmatpush.msra.mxu0 0.0
  %151 = vmatpush.msra.mxu0 0.0
  %152 = vmatpush.msra.mxu0 0.0
  %153 = vmatpush.msra.mxu0 %v106
  %154 = vmatpush.msra.mxu0 %v104
  %155 = vmatpush.msra.mxu0 %v102
  %156 = vmatpush.msra.mxu0 %v100
  %157 = vmatpush.msra.mxu0 %v98
  %158 = vmatpush.msra.mxu0 %v96
  %159 = vmatpush.msra.mxu0 %v94
  %160 = vmatpush.msra.mxu0 %v92
  %161 = vmatmul.f32.gmra.mxu0 %v108
  %v162 = vpop.f32.mrf.mxu0
  %v163 = vadd.f32 0.0, %v162
  %164 = vmatmul.f32.gmra.mxu0 %v110
  %v165 = vpop.f32.mrf.mxu0
  %v166 = vadd.f32 0.0, %v165
  %167 = vmatmul.f32.gmra.mxu0 %v112
  %v168 = vpop.f32.mrf.mxu0
  %v169 = vadd.f32 0.0, %v168
  %170 = vmatmul.f32.gmra.mxu0 %v114
  %v171 = vpop.f32.mrf.mxu0
  %v172 = vadd.f32 0.0, %v171
  %173 = vdwg.mxu0
  %v175 = vsel %vm107, %v61, 0
  %v177 = vsel %vm107, %v55, 0
  %v180 = vsel %vm107, %v62, 0
  %v182 = vsel %vm107, %v58, 0
  %184 = vmatpush.msra.mxu0 0.0
  %185 = vmatpush.msra.mxu0 0.0
  %186 = vmatpush.msra.mxu0 0.0
  %187 = vmatpush.msra.mxu0 0.0
  %188 = vmatpush.msra.mxu0 0.0
  %189 = vmatpush.msra.mxu0 0.0
  %190 = vmatpush.msra.mxu0 0.0
  %191 = vmatpush.msra.mxu0 0.0
  %192 = vmatpush.msra.mxu0 %v89
  %193 = vmatpush.msra.mxu0 %v87
  %194 = vmatpush.msra.mxu0 %v85
  %195 = vmatpush.msra.mxu0 %v83
  %196 = vmatpush.msra.mxu0 %v81
  %197 = vmatpush.msra.mxu0 %v79
  %198 = vmatpush.msra.mxu0 %v77
  %199 = vmatpush.msra.mxu0 %v75
  %200 = vmatmul.f32.gmra.mxu0 %v175
  %v201 = vpop.f32.mrf.mxu0
  %v202 = vadd.f32 %v134, %v201
  %203 = vmatmul.f32.gmra.mxu0 %v177
  %v204 = vpop.f32.mrf.mxu0
  %v205 = vadd.f32 %v137, %v204
  %206 = vmatmul.f32.gmra.mxu0 %v180
  %v207 = vpop.f32.mrf.mxu0
  %v208 = vadd.f32 %v140, %v207
  %209 = vmatmul.f32.gmra.mxu0 %v182
  %v210 = vpop.f32.mrf.mxu0
  %v211 = vadd.f32 %v143, %v210
  %212 = vdwg.mxu0
  %213 = vmatpush.msra.mxu0 0.0
  %214 = vmatpush.msra.mxu0 0.0
  %215 = vmatpush.msra.mxu0 0.0
  %216 = vmatpush.msra.mxu0 0.0
  %217 = vmatpush.msra.mxu0 0.0
  %218 = vmatpush.msra.mxu0 0.0
  %219 = vmatpush.msra.mxu0 0.0
  %220 = vmatpush.msra.mxu0 0.0
  %221 = vmatpush.msra.mxu0 %v90
  %222 = vmatpush.msra.mxu0 %v88
  %223 = vmatpush.msra.mxu0 %v86
  %224 = vmatpush.msra.mxu0 %v84
  %225 = vmatpush.msra.mxu0 %v82
  %226 = vmatpush.msra.mxu0 %v80
  %227 = vmatpush.msra.mxu0 %v78
  %228 = vmatpush.msra.mxu0 %v76
  %229 = vmatmul.f32.gmra.mxu0 %v175
  %v230 = vpop.f32.mrf.mxu0
  %v231 = vadd.f32 %v163, %v230
  %232 = vmatmul.f32.gmra.mxu0 %v177
  %v233 = vpop.f32.mrf.mxu0
  %v234 = vadd.f32 %v166, %v233
  %235 = vmatmul.f32.gmra.mxu0 %v180
  %v236 = vpop.f32.mrf.mxu0
  %v237 = vadd.f32 %v169, %v236
  %238 = vmatmul.f32.gmra.mxu0 %v182
  %v239 = vpop.f32.mrf.mxu0
  %v240 = vadd.f32 %v172, %v239
  %241 = vdwg.mxu0
  %v243 = vperm.slane %v74, 0
  %v244 = vperm.slane %v74, 1
  %v247 = vadd.f32 %v202, %v243
  %v248 = vadd.f32 %v231, %v244
  %v249 = vadd.f32 %v205, %v243
  %v250 = vadd.f32 %v234, %v244
  %v251 = vadd.f32 %v208, %v243
  %v252 = vadd.f32 %v237, %v244
  %v253 = vadd.f32 %v211, %v243
  %v254 = vadd.f32 %v240, %v244
  %v255 = vld [vmem:[%s4] sm:$0xff]
  %v256 = vld [vmem:[%s4 + $0x8] sm:$0xff]
  %v257 = vld [vmem:[%s4 + $0x10] sm:$0xff]
  %v258 = vld [vmem:[%s4 + $0x18] sm:$0xff]
  %v259 = vld [vmem:[%s4 + $0x20] sm:$0xff]
  %v260 = vld [vmem:[%s4 + $0x28] sm:$0xff]
  %v261 = vld [vmem:[%s4 + $0x30] sm:$0xff]
  %v262 = vld [vmem:[%s4 + $0x38] sm:$0xff]
  %v263 = vld [vmem:[%s4 + $0x40] sm:$0xff]
  %v264 = vld [vmem:[%s4 + $0x48] sm:$0xff]
  %v265 = vld [vmem:[%s4 + $0x50] sm:$0xff]
  %v266 = vld [vmem:[%s4 + $0x58] sm:$0xff]
  %v267 = vld [vmem:[%s4 + $0x60] sm:$0xff]
  %v268 = vld [vmem:[%s4 + $0x68] sm:$0xff]
  %v269 = vld [vmem:[%s4 + $0x70] sm:$0xff]
  %v270 = vld [vmem:[%s4 + $0x78] sm:$0xff]
  %v271 = vld [vmem:[%s5] sm:$0xff]
  %v272 = vld [vmem:[%s5 + $0x8] sm:$0xff]
  %v273 = vld [vmem:[%s5 + $0x10] sm:$0xff]
  %v274 = vld [vmem:[%s5 + $0x18] sm:$0xff]
  %v275 = vld [vmem:[%s5 + $0x20] sm:$0xff]
  %v276 = vld [vmem:[%s5 + $0x28] sm:$0xff]
  %v277 = vld [vmem:[%s5 + $0x30] sm:$0xff]
  %v278 = vld [vmem:[%s5 + $0x38] sm:$0xff]
  %v279 = vld [vmem:[%s5 + $0x40] sm:$0xff]
  %v280 = vld [vmem:[%s5 + $0x48] sm:$0xff]
  %v281 = vld [vmem:[%s5 + $0x50] sm:$0xff]
  %v282 = vld [vmem:[%s5 + $0x58] sm:$0xff]
  %v283 = vld [vmem:[%s5 + $0x60] sm:$0xff]
  %v284 = vld [vmem:[%s5 + $0x68] sm:$0xff]
  %v285 = vld [vmem:[%s5 + $0x70] sm:$0xff]
  %v286 = vld [vmem:[%s5 + $0x78] sm:$0xff]
  %v287 = vsel %vm107, %v66, 0
  %v290 = vsel %vm107, %v72, 0
  %v292 = vsel %vm107, %v69, 0
  %v295 = vsel %vm107, %v73, 0
  %297 = vmatpush.msra.mxu0 0.0
  %298 = vmatpush.msra.mxu0 0.0
  %299 = vmatpush.msra.mxu0 0.0
  %300 = vmatpush.msra.mxu0 0.0
  %301 = vmatpush.msra.mxu0 0.0
  %302 = vmatpush.msra.mxu0 0.0
  %303 = vmatpush.msra.mxu0 0.0
  %304 = vmatpush.msra.mxu0 0.0
  %305 = vmatpush.msra.mxu0 %v285
  %306 = vmatpush.msra.mxu0 %v283
  %307 = vmatpush.msra.mxu0 %v281
  %308 = vmatpush.msra.mxu0 %v279
  %309 = vmatpush.msra.mxu0 %v277
  %310 = vmatpush.msra.mxu0 %v275
  %311 = vmatpush.msra.mxu0 %v273
  %312 = vmatpush.msra.mxu0 %v271
  %313 = vmatmul.f32.gmra.mxu0 %v287
  %v314 = vpop.f32.mrf.mxu0
  %v315 = vadd.f32 0.0, %v314
  %316 = vmatmul.f32.gmra.mxu0 %v290
  %v317 = vpop.f32.mrf.mxu0
  %v318 = vadd.f32 0.0, %v317
  %319 = vmatmul.f32.gmra.mxu0 %v292
  %v320 = vpop.f32.mrf.mxu0
  %v321 = vadd.f32 0.0, %v320
  %322 = vmatmul.f32.gmra.mxu0 %v295
  %v323 = vpop.f32.mrf.mxu0
  %v324 = vadd.f32 0.0, %v323
  %325 = vdwg.mxu0
  %326 = vmatpush.msra.mxu0 0.0
  %327 = vmatpush.msra.mxu0 0.0
  %328 = vmatpush.msra.mxu0 0.0
  %329 = vmatpush.msra.mxu0 0.0
  %330 = vmatpush.msra.mxu0 0.0
  %331 = vmatpush.msra.mxu0 0.0
  %332 = vmatpush.msra.mxu0 0.0
  %333 = vmatpush.msra.mxu0 0.0
  %334 = vmatpush.msra.mxu0 %v286
  %335 = vmatpush.msra.mxu0 %v284
  %336 = vmatpush.msra.mxu0 %v282
  %337 = vmatpush.msra.mxu0 %v280
  %338 = vmatpush.msra.mxu0 %v278
  %339 = vmatpush.msra.mxu0 %v276
  %340 = vmatpush.msra.mxu0 %v274
  %341 = vmatpush.msra.mxu0 %v272
  %342 = vmatmul.f32.gmra.mxu0 %v287
  %v343 = vpop.f32.mrf.mxu0
  %v344 = vadd.f32 0.0, %v343
  %345 = vmatmul.f32.gmra.mxu0 %v290
  %v346 = vpop.f32.mrf.mxu0
  %v347 = vadd.f32 0.0, %v346
  %348 = vmatmul.f32.gmra.mxu0 %v292
  %v349 = vpop.f32.mrf.mxu0
  %v350 = vadd.f32 0.0, %v349
  %351 = vmatmul.f32.gmra.mxu0 %v295
  %v352 = vpop.f32.mrf.mxu0
  %v353 = vadd.f32 0.0, %v352
  %354 = vdwg.mxu0
  %355 = vmatpush.msra.mxu0 0.0
  %356 = vmatpush.msra.mxu0 0.0
  %357 = vmatpush.msra.mxu0 0.0
  %358 = vmatpush.msra.mxu0 0.0
  %359 = vmatpush.msra.mxu0 0.0
  %360 = vmatpush.msra.mxu0 0.0
  %361 = vmatpush.msra.mxu0 0.0
  %362 = vmatpush.msra.mxu0 0.0
  %363 = vmatpush.msra.mxu0 %v269
  %364 = vmatpush.msra.mxu0 %v267
  %365 = vmatpush.msra.mxu0 %v265
  %366 = vmatpush.msra.mxu0 %v263
  %367 = vmatpush.msra.mxu0 %v261
  %368 = vmatpush.msra.mxu0 %v259
  %369 = vmatpush.msra.mxu0 %v257
  %370 = vmatpush.msra.mxu0 %v255
  %371 = vmatmul.f32.gmra.mxu0 %v108
  %v372 = vpop.f32.mrf.mxu0
  %v373 = vadd.f32 %v315, %v372
  %374 = vmatmul.f32.gmra.mxu0 %v110
  %v375 = vpop.f32.mrf.mxu0
  %v376 = vadd.f32 %v318, %v375
  %377 = vmatmul.f32.gmra.mxu0 %v112
  %v378 = vpop.f32.mrf.mxu0
  %v379 = vadd.f32 %v321, %v378
  %380 = vmatmul.f32.gmra.mxu0 %v114
  %v381 = vpop.f32.mrf.mxu0
  %v382 = vadd.f32 %v324, %v381
  %383 = vdwg.mxu0
  %384 = vmatpush.msra.mxu0 0.0
  %385 = vmatpush.msra.mxu0 0.0
  %386 = vmatpush.msra.mxu0 0.0
  %387 = vmatpush.msra.mxu0 0.0
  %388 = vmatpush.msra.mxu0 0.0
  %389 = vmatpush.msra.mxu0 0.0
  %390 = vmatpush.msra.mxu0 0.0
  %391 = vmatpush.msra.mxu0 0.0
  %392 = vmatpush.msra.mxu0 %v270
  %393 = vmatpush.msra.mxu0 %v268
  %394 = vmatpush.msra.mxu0 %v266
  %395 = vmatpush.msra.mxu0 %v264
  %396 = vmatpush.msra.mxu0 %v262
  %397 = vmatpush.msra.mxu0 %v260
  %398 = vmatpush.msra.mxu0 %v258
  %399 = vmatpush.msra.mxu0 %v256
  %400 = vmatmul.f32.gmra.mxu0 %v108
  %v401 = vpop.f32.mrf.mxu0
  %v402 = vadd.f32 %v344, %v401
  %403 = vmatmul.f32.gmra.mxu0 %v110
  %v404 = vpop.f32.mrf.mxu0
  %v405 = vadd.f32 %v347, %v404
  %406 = vmatmul.f32.gmra.mxu0 %v112
  %v407 = vpop.f32.mrf.mxu0
  %v408 = vadd.f32 %v350, %v407
  %409 = vmatmul.f32.gmra.mxu0 %v114
  %v410 = vpop.f32.mrf.mxu0
  %v411 = vadd.f32 %v353, %v410
  %412 = vdwg.mxu0
  %v413 = vadd.f32 %v373, %v243
  %v414 = vadd.f32 %v402, %v244
  %v415 = vadd.f32 %v376, %v243
  %v416 = vadd.f32 %v405, %v244
  %v417 = vadd.f32 %v379, %v243
  %v418 = vadd.f32 %v408, %v244
  %v419 = vadd.f32 %v382, %v243
  %v420 = vadd.f32 %v411, %v244
  %v421 = vadd.f32 %v247, %v249
  %v422 = vadd.f32 %v421, %v251
  %v423 = vadd.f32 %v422, %v253
  %v424 = vrot.slane %v423, 4
  %v425 = vadd.f32 %v423, %v424
  %v426 = vrot.slane %v425, 2
  %v427 = vadd.f32 %v425, %v426
  %v428 = vrot.slane %v427, 1
  %v429 = vadd.f32 %v427, %v428
  %v430 = vadd.f32 %v248, %v250
  %v431 = vadd.f32 %v430, %v252
  %v432 = vadd.f32 %v431, %v254
  %v433 = vrot.slane %v432, 4
  %v434 = vadd.f32 %v432, %v433
  %v435 = vrot.slane %v434, 2
  %v436 = vadd.f32 %v434, %v435
  %v437 = vrot.slane %v436, 1
  %v438 = vadd.f32 %v436, %v437
  %v439 = vadd.f32 %v413, %v415
  %v440 = vadd.f32 %v439, %v417
  %v441 = vadd.f32 %v440, %v419
  %v442 = vrot.slane %v441, 4
  %v443 = vadd.f32 %v441, %v442
  %v444 = vrot.slane %v443, 2
  %v445 = vadd.f32 %v443, %v444
  %v446 = vrot.slane %v445, 1
  %v447 = vadd.f32 %v445, %v446
  %v448 = vadd.f32 %v414, %v416
  %v449 = vadd.f32 %v448, %v418
  %v450 = vadd.f32 %v449, %v420
  %v451 = vrot.slane %v450, 4
  %v452 = vadd.f32 %v450, %v451
  %v453 = vrot.slane %v452, 2
  %v454 = vadd.f32 %v452, %v453
  %v455 = vrot.slane %v454, 1
  %v456 = vadd.f32 %v454, %v455
  %v457 = vadd.f32 %v429, %v447
  %v458 = vadd.f32 %v438, %v456
  %v461 = vrot.slane %v458, 7
  %v462 = vsel %vm52, %v457, %v461
  %v464 = vlaneseq
  %vm465 = vcmp.ge.s32.totalorder %v464, 0
  %vm466 = vcmp.lt.s32.totalorder %v464, 256
  %vm467 = vmand %vm465, %vm466
  %468 = vst.msk [vmem:[%s8] ss:$2 sm:$0x3] %vm467, %v462
  %v469 = vmul.f32 %v247, %v247
  %v470 = vmul.f32 %v248, %v248
  %v471 = vmul.f32 %v249, %v249
  %v472 = vmul.f32 %v250, %v250
  %v473 = vmul.f32 %v251, %v251
  %v474 = vmul.f32 %v252, %v252
  %v475 = vmul.f32 %v253, %v253
  %v476 = vmul.f32 %v254, %v254
  %v477 = vadd.f32 %v469, %v471
  %v478 = vadd.f32 %v477, %v473
  %v479 = vadd.f32 %v478, %v475
  %v480 = vrot.slane %v479, 4
  %v481 = vadd.f32 %v479, %v480
  %v482 = vrot.slane %v481, 2
  %v483 = vadd.f32 %v481, %v482
  %v484 = vrot.slane %v483, 1
  %v485 = vadd.f32 %v483, %v484
  %v486 = vadd.f32 %v470, %v472
  %v487 = vadd.f32 %v486, %v474
  %v488 = vadd.f32 %v487, %v476
  %v489 = vrot.slane %v488, 4
  %v490 = vadd.f32 %v488, %v489
  %v491 = vrot.slane %v490, 2
  %v492 = vadd.f32 %v490, %v491
  %v493 = vrot.slane %v492, 1
  %v494 = vadd.f32 %v492, %v493
  %v495 = vmul.f32 %v413, %v413
  %v496 = vmul.f32 %v414, %v414
  %v497 = vmul.f32 %v415, %v415
  %v498 = vmul.f32 %v416, %v416
  %v499 = vmul.f32 %v417, %v417
  %v500 = vmul.f32 %v418, %v418
  %v501 = vmul.f32 %v419, %v419
  %v502 = vmul.f32 %v420, %v420
  %v503 = vadd.f32 %v495, %v497
  %v504 = vadd.f32 %v503, %v499
  %v505 = vadd.f32 %v504, %v501
  %v506 = vrot.slane %v505, 4
  %v507 = vadd.f32 %v505, %v506
  %v508 = vrot.slane %v507, 2
  %v509 = vadd.f32 %v507, %v508
  %v510 = vrot.slane %v509, 1
  %v511 = vadd.f32 %v509, %v510
  %v512 = vadd.f32 %v496, %v498
  %v513 = vadd.f32 %v512, %v500
  %v514 = vadd.f32 %v513, %v502
  %v515 = vrot.slane %v514, 4
  %v516 = vadd.f32 %v514, %v515
  %v517 = vrot.slane %v516, 2
  %v518 = vadd.f32 %v516, %v517
  %v519 = vrot.slane %v518, 1
  %v520 = vadd.f32 %v518, %v519
  %v521 = vadd.f32 %v485, %v511
  %v522 = vadd.f32 %v494, %v520
  %v525 = vrot.slane %v522, 7
  %v526 = vsel %vm52, %v521, %v525
  %s528 = scalar_lea.vmem %s8, 1
  %529 = vst.msk [vmem:[%s528] ss:$2 sm:$0x3] %vm467, %v526
  %v530 = vpack.c.bf16 %v248, %v247
  %v531 = vpack.c.bf16 %v250, %v249
  %v532 = vpack.c.bf16 %v252, %v251
  %v533 = vpack.c.bf16 %v254, %v253
  %534 = vst [vmem:[%s7] sm:$0xff] %v530
  %535 = vst [vmem:[%s7 + $0x10] sm:$0xff] %v531
  %536 = vst [vmem:[%s7 + $0x20] sm:$0xff] %v532
  %537 = vst [vmem:[%s7 + $0x30] sm:$0xff] %v533
  %v538 = vpack.c.bf16 %v414, %v413
  %v539 = vpack.c.bf16 %v416, %v415
  %v540 = vpack.c.bf16 %v418, %v417
  %v541 = vpack.c.bf16 %v420, %v419
  %542 = vst [vmem:[%s7 + $0x8] sm:$0xff] %v538
  %543 = vst [vmem:[%s7 + $0x18] sm:$0xff] %v539
  %544 = vst [vmem:[%s7 + $0x28] sm:$0xff] %v540
  %545 = vst [vmem:[%s7 + $0x38] sm:$0xff] %v541
  // Predicated region
  $region30: #{res_gen_block.2} parent=0 // pred_check
    _
  $region31: #{res_gen_block.2} parent=0 // pred_check_branch
    %547 = sbr.rel (0) target = $region33
  $region32: #{res_gen_block.2} parent=0 // pred_region
    _
  $region33: #{res_gen_block.2} parent=0 // pred_fallthru
    _
  // Predicated region
  $region34: #{res_gen_block.2} parent=0 // pred_check
    _
  $region35: #{res_gen_block.2} parent=0 // pred_check_branch
    %549 = sbr.rel (0) target = $region37
  $region36: #{res_gen_block.2} parent=0 // pred_region
    _
  $region37: #{res_gen_block.2} parent=0 // pred_fallthru
    _
  // Predicated region
  $region38: #{res_gen_block.2} parent=0 // pred_check
    _
  $region39: #{res_gen_block.2} parent=0 // pred_check_branch
    %551 = sbr.rel (0) target = $region41
  $region40: #{res_gen_block.2} parent=0 // pred_region
    _
  $region41: #{res_gen_block.2} parent=0 // pred_fallthru
    _
  // Predicated region
  $region42: #{res_gen_block.2} parent=0 // pred_check
    _
  $region43: #{res_gen_block.2} parent=0 // pred_check_branch
    %553 = sbr.rel (0) target = $region45
  $region44: #{res_gen_block.2} parent=0 // pred_region
    _
  $region45: #{res_gen_block.2} parent=0 // pred_fallthru
    _

// kernel: res_gen_block.3
$region0: #{res_gen_block.3}
  #allocation0 [shape = 'u32[]', space=smem, size = 0x4, offset = 0x4, fixed_abs, tag = 'smem constant byte address 0x4 - core index']
  #allocation1 [shape = 'u32[72,128]{1,0:T(1,128)}', space=vmem, size = 0x9000, scoped, tag = 'internal scratch']
  %s0 = inlined_call_operand.vmem [shape: bf16[2,16,512], index: 0, kind: input, shape index: {}]
  %s1 = inlined_call_operand.vmem [shape: f32[2,16,64], index: 1, kind: input, shape index: {}]
  %s2 = inlined_call_operand.vmem [shape: f32[2,512], index: 2, kind: input, shape index: {}]
  %s3 = inlined_call_operand.vmem [shape: f32[256,256], index: 3, kind: input, shape index: {}]
  %s4 = inlined_call_operand.vmem [shape: f32[256,256], index: 4, kind: input, shape index: {}]
  %s5 = inlined_call_operand.vmem [shape: f32[256,256], index: 5, kind: input, shape index: {}]
  %s6 = inlined_call_operand.vmem [shape: f32[2,256], index: 6, kind: input, shape index: {}]
  %s7 = inlined_call_operand.vmem [shape: f32[64,256], index: 7, kind: input, shape index: {}]
  %s8 = inlined_call_operand.vmem [shape: f32[2,16,512], index: 8, kind: output, shape index: {}]
  %s9 = sld [smem:[#allocation0]]
  $region42: #{res_gen_block.3} parent=0
    _
  %s11 = ssub.s32 1, %s9
  %s12 = scalar_select 0, %s11, %s9
  // Predicated region
  $region2: #{res_gen_block.3} parent=0 // pred_check
    _
  $region3: #{res_gen_block.3} parent=0 // pred_check_branch
    %14 = sbr.rel (0) target = $region5
  $region4: #{res_gen_block.3} parent=0 // pred_region
    _
  $region5: #{res_gen_block.3} parent=0 // pred_fallthru
    _
  // Predicated region
  $region6: #{res_gen_block.3} parent=0 // pred_check
    _
  $region7: #{res_gen_block.3} parent=0 // pred_check_branch
    %16 = sbr.rel (0) target = $region9
  $region8: #{res_gen_block.3} parent=0 // pred_region
    _
  $region9: #{res_gen_block.3} parent=0 // pred_fallthru
    _
  // Predicated region
  $region10: #{res_gen_block.3} parent=0 // pred_check
    _
  $region11: #{res_gen_block.3} parent=0 // pred_check_branch
    %18 = sbr.rel (0) target = $region13
  $region12: #{res_gen_block.3} parent=0 // pred_region
    _
  $region13: #{res_gen_block.3} parent=0 // pred_fallthru
    _
  // Predicated region
  $region14: #{res_gen_block.3} parent=0 // pred_check
    _
  $region15: #{res_gen_block.3} parent=0 // pred_check_branch
    %20 = sbr.rel (0) target = $region17
  $region16: #{res_gen_block.3} parent=0 // pred_region
    _
  $region17: #{res_gen_block.3} parent=0 // pred_fallthru
    _
  // Predicated region
  $region18: #{res_gen_block.3} parent=0 // pred_check
    _
  $region19: #{res_gen_block.3} parent=0 // pred_check_branch
    %22 = sbr.rel (0) target = $region21
  $region20: #{res_gen_block.3} parent=0 // pred_region
    _
  $region21: #{res_gen_block.3} parent=0 // pred_fallthru
    _
  // Predicated region
  $region22: #{res_gen_block.3} parent=0 // pred_check
    _
  $region23: #{res_gen_block.3} parent=0 // pred_check_branch
    %24 = sbr.rel (0) target = $region25
  $region24: #{res_gen_block.3} parent=0 // pred_region
    _
  $region25: #{res_gen_block.3} parent=0 // pred_fallthru
    _
  // Predicated region
  $region26: #{res_gen_block.3} parent=0 // pred_check
    _
  $region27: #{res_gen_block.3} parent=0 // pred_check_branch
    %26 = sbr.rel (0) target = $region29
  $region28: #{res_gen_block.3} parent=0 // pred_region
    _
  $region29: #{res_gen_block.3} parent=0 // pred_fallthru
    _
  // Predicated region
  $region30: #{res_gen_block.3} parent=0 // pred_check
    _
  $region31: #{res_gen_block.3} parent=0 // pred_check_branch
    %28 = sbr.rel (0) target = $region33
  $region32: #{res_gen_block.3} parent=0 // pred_region
    _
  $region33: #{res_gen_block.3} parent=0 // pred_fallthru
    _
  %v29 = vld [vmem:[%s0] sm:$0xff]
  %v30 = vld [vmem:[%s0 + $0x8] sm:$0xff]
  %v31 = vld [vmem:[%s0 + $0x10] sm:$0xff]
  %v32 = vld [vmem:[%s0 + $0x18] sm:$0xff]
  %v33 = vld [vmem:[%s0 + $0x20] sm:$0xff]
  %v34 = vld [vmem:[%s0 + $0x28] sm:$0xff]
  %v35 = vld [vmem:[%s0 + $0x30] sm:$0xff]
  %v36 = vld [vmem:[%s0 + $0x38] sm:$0xff]
  %v37 = vunpack.c.l.bf16 %v29
  %v38 = vunpack.c.h.bf16 %v29
  %v39 = vunpack.c.l.bf16 %v30
  %v40 = vunpack.c.h.bf16 %v30
  %v41 = vunpack.c.l.bf16 %v31
  %v42 = vunpack.c.h.bf16 %v31
  %v43 = vunpack.c.l.bf16 %v32
  %v44 = vunpack.c.h.bf16 %v32
  %v45 = vunpack.c.l.bf16 %v33
  %v46 = vunpack.c.h.bf16 %v33
  %v47 = vunpack.c.l.bf16 %v34
  %v48 = vunpack.c.h.bf16 %v34
  %v49 = vunpack.c.l.bf16 %v35
  %v50 = vunpack.c.h.bf16 %v35
  %v51 = vunpack.c.l.bf16 %v36
  %v52 = vunpack.c.h.bf16 %v36
  %v53 = vld [vmem:[%s2] ss:$2 sm:$0xf]
  %v55 = vperm.slane %v53, 0
  %v56 = vperm.slane %v53, 1
  %v57 = vperm.slane %v53, 2
  %v58 = vperm.slane %v53, 3
  %v63 = vmul.f32 %v37, %v55
  %v64 = vmul.f32 %v38, %v56
  %v65 = vmul.f32 %v39, %v57
  %v66 = vmul.f32 %v40, %v58
  %v67 = vmul.f32 %v41, %v55
  %v68 = vmul.f32 %v42, %v56
  %v69 = vmul.f32 %v43, %v57
  %v70 = vmul.f32 %v44, %v58
  %v71 = vmul.f32 %v45, %v55
  %v72 = vmul.f32 %v46, %v56
  %v73 = vmul.f32 %v47, %v57
  %v74 = vmul.f32 %v48, %v58
  %v75 = vmul.f32 %v49, %v55
  %v76 = vmul.f32 %v50, %v56
  %v77 = vmul.f32 %v51, %v57
  %v78 = vmul.f32 %v52, %v58
  %s79 = scalar_lea.vmem %s2, 1
  %v80 = vld [vmem:[%s79] ss:$2 sm:$0xf]
  %v82 = vperm.slane %v80, 0
  %v83 = vperm.slane %v80, 1
  %v84 = vperm.slane %v80, 2
  %v85 = vperm.slane %v80, 3
  %v90 = vadd.f32 %v63, %v82
  %v91 = vadd.f32 %v64, %v83
  %v92 = vadd.f32 %v65, %v84
  %v93 = vadd.f32 %v66, %v85
  %v94 = vadd.f32 %v67, %v82
  %v95 = vadd.f32 %v68, %v83
  %v96 = vadd.f32 %v69, %v84
  %v97 = vadd.f32 %v70, %v85
  %v98 = vadd.f32 %v71, %v82
  %v99 = vadd.f32 %v72, %v83
  %v100 = vadd.f32 %v73, %v84
  %v101 = vadd.f32 %v74, %v85
  %v102 = vadd.f32 %v75, %v82
  %v103 = vadd.f32 %v76, %v83
  %v104 = vadd.f32 %v77, %v84
  %v105 = vadd.f32 %v78, %v85
  %v106 = vmax.f32 %v90, 0.0
  %v107 = vmax.f32 %v91, 0.0
  %v108 = vmax.f32 %v92, 0.0
  %v109 = vmax.f32 %v93, 0.0
  %v110 = vmax.f32 %v94, 0.0
  %v111 = vmax.f32 %v95, 0.0
  %v112 = vmax.f32 %v96, 0.0
  %v113 = vmax.f32 %v97, 0.0
  %v114 = vmax.f32 %v98, 0.0
  %v115 = vmax.f32 %v99, 0.0
  %v116 = vmax.f32 %v100, 0.0
  %v117 = vmax.f32 %v101, 0.0
  %v118 = vmax.f32 %v102, 0.0
  %v119 = vmax.f32 %v103, 0.0
  %v120 = vmax.f32 %v104, 0.0
  %v121 = vmax.f32 %v105, 0.0
  %vm130 = vcmask 1040384
  %v131 = vrot.slane %v108, 7
  %v132 = vrot.slane %v109, 7
  %v133 = vrot.slane %v112, 7
  %v134 = vsel %vm130, %v131, %v133
  %v135 = vrot.slane %v113, 7
  %v136 = vsel %vm130, %v132, %v135
  %v137 = vrot.slane %v116, 7
  %v138 = vrot.slane %v117, 7
  %v139 = vrot.slane %v120, 7
  %v140 = vsel %vm130, %v137, %v139
  %v141 = vrot.slane %v121, 7
  %v142 = vsel %vm130, %v138, %v141
  %v151 = vsel %vm130, 0.0, %v131
  %v152 = vsel %vm130, 0.0, %v132
  %v153 = vsel %vm130, 0.0, %v137
  %v154 = vsel %vm130, 0.0, %v138
  %vm163 = vcmask 1046528
  %v164 = vrot.slane %v106, 1
  %v165 = vrot.slane %v110, 1
  %v166 = vsel %vm163, %v164, %v165
  %v167 = vrot.slane %v107, 1
  %v168 = vrot.slane %v111, 1
  %v169 = vsel %vm163, %v167, %v168
  %v170 = vrot.slane %v114, 1
  %v171 = vrot.slane %v118, 1
  %v172 = vsel %vm163, %v170, %v171
  %v173 = vrot.slane %v115, 1
  %v174 = vrot.slane %v119, 1
  %v175 = vsel %vm163, %v173, %v174
  %v184 = vsel %vm163, %v165, 0.0
  %v185 = vsel %vm163, %v168, 0.0
  %v186 = vsel %vm163, %v171, 0.0
  %v187 = vsel %vm163, %v174, 0.0
  %v188 = vld [vmem:[%s6] ss:$2 sm:$0x3]
  %s189 = scalar_lea.vmem %s6, 1
  %v190 = vld [vmem:[%s189] ss:$2 sm:$0x3]
  %v191 = vld [vmem:[%s3] sm:$0xff]
  %v192 = vld [vmem:[%s3 + $0x8] sm:$0xff]
  %v193 = vld [vmem:[%s3 + $0x10] sm:$0xff]
  %v194 = vld [vmem:[%s3 + $0x18] sm:$0xff]
  %v195 = vld [vmem:[%s3 + $0x20] sm:$0xff]
  %v196 = vld [vmem:[%s3 + $0x28] sm:$0xff]
  %v197 = vld [vmem:[%s3 + $0x30] sm:$0xff]
  %v198 = vld [vmem:[%s3 + $0x38] sm:$0xff]
  %v199 = vld [vmem:[%s3 + $0x40] sm:$0xff]
  %v200 = vld [vmem:[%s3 + $0x48] sm:$0xff]
  %v201 = vld [vmem:[%s3 + $0x50] sm:$0xff]
  %v202 = vld [vmem:[%s3 + $0x58] sm:$0xff]
  %v203 = vld [vmem:[%s3 + $0x60] sm:$0xff]
  %v204 = vld [vmem:[%s3 + $0x68] sm:$0xff]
  %v205 = vld [vmem:[%s3 + $0x70] sm:$0xff]
  %v206 = vld [vmem:[%s3 + $0x78] sm:$0xff]
  %v207 = vld [vmem:[%s3 + $0x80] sm:$0xff]
  %v208 = vld [vmem:[%s3 + $0x88] sm:$0xff]
  %v209 = vld [vmem:[%s3 + $0x90] sm:$0xff]
  %v210 = vld [vmem:[%s3 + $0x98] sm:$0xff]
  %v211 = vld [vmem:[%s3 + $0xa0] sm:$0xff]
  %v212 = vld [vmem:[%s3 + $0xa8] sm:$0xff]
  %v213 = vld [vmem:[%s3 + $0xb0] sm:$0xff]
  %v214 = vld [vmem:[%s3 + $0xb8] sm:$0xff]
  %v215 = vld [vmem:[%s3 + $0xc0] sm:$0xff]
  %v216 = vld [vmem:[%s3 + $0xc8] sm:$0xff]
  %v217 = vld [vmem:[%s3 + $0xd0] sm:$0xff]
  %v218 = vld [vmem:[%s3 + $0xd8] sm:$0xff]
  %v219 = vld [vmem:[%s3 + $0xe0] sm:$0xff]
  %v220 = vld [vmem:[%s3 + $0xe8] sm:$0xff]
  %v221 = vld [vmem:[%s3 + $0xf0] sm:$0xff]
  %v222 = vld [vmem:[%s3 + $0xf8] sm:$0xff]
  %v223 = vld [vmem:[%s3 + $0x100] sm:$0xff]
  %v224 = vld [vmem:[%s3 + $0x108] sm:$0xff]
  %v225 = vld [vmem:[%s3 + $0x110] sm:$0xff]
  %v226 = vld [vmem:[%s3 + $0x118] sm:$0xff]
  %v227 = vld [vmem:[%s3 + $0x120] sm:$0xff]
  %v228 = vld [vmem:[%s3 + $0x128] sm:$0xff]
  %v229 = vld [vmem:[%s3 + $0x130] sm:$0xff]
  %v230 = vld [vmem:[%s3 + $0x138] sm:$0xff]
  %v231 = vld [vmem:[%s3 + $0x140] sm:$0xff]
  %v232 = vld [vmem:[%s3 + $0x148] sm:$0xff]
  %v233 = vld [vmem:[%s3 + $0x150] sm:$0xff]
  %v234 = vld [vmem:[%s3 + $0x158] sm:$0xff]
  %v235 = vld [vmem:[%s3 + $0x160] sm:$0xff]
  %v236 = vld [vmem:[%s3 + $0x168] sm:$0xff]
  %v237 = vld [vmem:[%s3 + $0x170] sm:$0xff]
  %v238 = vld [vmem:[%s3 + $0x178] sm:$0xff]
  %v239 = vld [vmem:[%s3 + $0x180] sm:$0xff]
  %v240 = vld [vmem:[%s3 + $0x188] sm:$0xff]
  %v241 = vld [vmem:[%s3 + $0x190] sm:$0xff]
  %v242 = vld [vmem:[%s3 + $0x198] sm:$0xff]
  %v243 = vld [vmem:[%s3 + $0x1a0] sm:$0xff]
  %v244 = vld [vmem:[%s3 + $0x1a8] sm:$0xff]
  %v245 = vld [vmem:[%s3 + $0x1b0] sm:$0xff]
  %v246 = vld [vmem:[%s3 + $0x1b8] sm:$0xff]
  %v247 = vld [vmem:[%s3 + $0x1c0] sm:$0xff]
  %v248 = vld [vmem:[%s3 + $0x1c8] sm:$0xff]
  %v249 = vld [vmem:[%s3 + $0x1d0] sm:$0xff]
  %v250 = vld [vmem:[%s3 + $0x1d8] sm:$0xff]
  %v251 = vld [vmem:[%s3 + $0x1e0] sm:$0xff]
  %v252 = vld [vmem:[%s3 + $0x1e8] sm:$0xff]
  %v253 = vld [vmem:[%s3 + $0x1f0] sm:$0xff]
  %v254 = vld [vmem:[%s3 + $0x1f8] sm:$0xff]
  %v255 = vld [vmem:[%s4] sm:$0xff]
  %v256 = vld [vmem:[%s4 + $0x8] sm:$0xff]
  %v257 = vld [vmem:[%s4 + $0x10] sm:$0xff]
  %v258 = vld [vmem:[%s4 + $0x18] sm:$0xff]
  %v259 = vld [vmem:[%s4 + $0x20] sm:$0xff]
  %v260 = vld [vmem:[%s4 + $0x28] sm:$0xff]
  %v261 = vld [vmem:[%s4 + $0x30] sm:$0xff]
  %v262 = vld [vmem:[%s4 + $0x38] sm:$0xff]
  %v263 = vld [vmem:[%s4 + $0x40] sm:$0xff]
  %v264 = vld [vmem:[%s4 + $0x48] sm:$0xff]
  %v265 = vld [vmem:[%s4 + $0x50] sm:$0xff]
  %v266 = vld [vmem:[%s4 + $0x58] sm:$0xff]
  %v267 = vld [vmem:[%s4 + $0x60] sm:$0xff]
  %v268 = vld [vmem:[%s4 + $0x68] sm:$0xff]
  %v269 = vld [vmem:[%s4 + $0x70] sm:$0xff]
  %v270 = vld [vmem:[%s4 + $0x78] sm:$0xff]
  %v271 = vld [vmem:[%s4 + $0x80] sm:$0xff]
  %v272 = vld [vmem:[%s4 + $0x88] sm:$0xff]
  %v273 = vld [vmem:[%s4 + $0x90] sm:$0xff]
  %v274 = vld [vmem:[%s4 + $0x98] sm:$0xff]
  %v275 = vld [vmem:[%s4 + $0xa0] sm:$0xff]
  %v276 = vld [vmem:[%s4 + $0xa8] sm:$0xff]
  %v277 = vld [vmem:[%s4 + $0xb0] sm:$0xff]
  %v278 = vld [vmem:[%s4 + $0xb8] sm:$0xff]
  %v279 = vld [vmem:[%s4 + $0xc0] sm:$0xff]
  %v280 = vld [vmem:[%s4 + $0xc8] sm:$0xff]
  %v281 = vld [vmem:[%s4 + $0xd0] sm:$0xff]
  %v282 = vld [vmem:[%s4 + $0xd8] sm:$0xff]
  %v283 = vld [vmem:[%s4 + $0xe0] sm:$0xff]
  %v284 = vld [vmem:[%s4 + $0xe8] sm:$0xff]
  %v285 = vld [vmem:[%s4 + $0xf0] sm:$0xff]
  %v286 = vld [vmem:[%s4 + $0xf8] sm:$0xff]
  %v287 = vld [vmem:[%s4 + $0x100] sm:$0xff]
  %v288 = vld [vmem:[%s4 + $0x108] sm:$0xff]
  %v289 = vld [vmem:[%s4 + $0x110] sm:$0xff]
  %v290 = vld [vmem:[%s4 + $0x118] sm:$0xff]
  %v291 = vld [vmem:[%s4 + $0x120] sm:$0xff]
  %v292 = vld [vmem:[%s4 + $0x128] sm:$0xff]
  %v293 = vld [vmem:[%s4 + $0x130] sm:$0xff]
  %v294 = vld [vmem:[%s4 + $0x138] sm:$0xff]
  %v295 = vld [vmem:[%s4 + $0x140] sm:$0xff]
  %v296 = vld [vmem:[%s4 + $0x148] sm:$0xff]
  %v297 = vld [vmem:[%s4 + $0x150] sm:$0xff]
  %v298 = vld [vmem:[%s4 + $0x158] sm:$0xff]
  %v299 = vld [vmem:[%s4 + $0x160] sm:$0xff]
  %v300 = vld [vmem:[%s4 + $0x168] sm:$0xff]
  %v301 = vld [vmem:[%s4 + $0x170] sm:$0xff]
  %v302 = vld [vmem:[%s4 + $0x178] sm:$0xff]
  %v303 = vld [vmem:[%s4 + $0x180] sm:$0xff]
  %v304 = vld [vmem:[%s4 + $0x188] sm:$0xff]
  %v305 = vld [vmem:[%s4 + $0x190] sm:$0xff]
  %v306 = vld [vmem:[%s4 + $0x198] sm:$0xff]
  %v307 = vld [vmem:[%s4 + $0x1a0] sm:$0xff]
  %v308 = vld [vmem:[%s4 + $0x1a8] sm:$0xff]
  %v309 = vld [vmem:[%s4 + $0x1b0] sm:$0xff]
  %v310 = vld [vmem:[%s4 + $0x1b8] sm:$0xff]
  %v311 = vld [vmem:[%s4 + $0x1c0] sm:$0xff]
  %v312 = vld [vmem:[%s4 + $0x1c8] sm:$0xff]
  %v313 = vld [vmem:[%s4 + $0x1d0] sm:$0xff]
  %v314 = vld [vmem:[%s4 + $0x1d8] sm:$0xff]
  %v315 = vld [vmem:[%s4 + $0x1e0] sm:$0xff]
  %v316 = vld [vmem:[%s4 + $0x1e8] sm:$0xff]
  %v317 = vld [vmem:[%s4 + $0x1f0] sm:$0xff]
  %v318 = vld [vmem:[%s4 + $0x1f8] sm:$0xff]
  %319 = vmatpush.msra.mxu0 %v285
  %320 = vmatpush.msra.mxu0 %v283
  %321 = vmatpush.msra.mxu0 %v281
  %322 = vmatpush.msra.mxu0 %v279
  %323 = vmatpush.msra.mxu0 %v277
  %324 = vmatpush.msra.mxu0 %v275
  %325 = vmatpush.msra.mxu0 %v273
  %326 = vmatpush.msra.mxu0 %v271
  %327 = vmatpush.msra.mxu0 %v269
  %328 = vmatpush.msra.mxu0 %v267
  %329 = vmatpush.msra.mxu0 %v265
  %330 = vmatpush.msra.mxu0 %v263
  %331 = vmatpush.msra.mxu0 %v261
  %332 = vmatpush.msra.mxu0 %v259
  %333 = vmatpush.msra.mxu0 %v257
  %334 = vmatpush.msra.mxu0 %v255
  %335 = vmatmul.f32.gmra.mxu0 %v106
  %v336 = vpop.f32.mrf.mxu0
  %v337 = vadd.f32 0.0, %v336
  %338 = vmatmul.f32.gmra.mxu0 %v110
  %v339 = vpop.f32.mrf.mxu0
  %v340 = vadd.f32 0.0, %v339
  %341 = vmatmul.f32.gmra.mxu0 %v114
  %v342 = vpop.f32.mrf.mxu0
  %v343 = vadd.f32 0.0, %v342
  %344 = vmatmul.f32.gmra.mxu0 %v118
  %v345 = vpop.f32.mrf.mxu0
  %v346 = vadd.f32 0.0, %v345
  %347 = vdwg.mxu0
  %348 = vmatpush.msra.mxu0 %v317
  %349 = vmatpush.msra.mxu0 %v315
  %350 = vmatpush.msra.mxu0 %v313
  %351 = vmatpush.msra.mxu0 %v311
  %352 = vmatpush.msra.mxu0 %v309
  %353 = vmatpush.msra.mxu0 %v307
  %354 = vmatpush.msra.mxu0 %v305
  %355 = vmatpush.msra.mxu0 %v303
  %356 = vmatpush.msra.mxu0 %v301
  %357 = vmatpush.msra.mxu0 %v299
  %358 = vmatpush.msra.mxu0 %v297
  %359 = vmatpush.msra.mxu0 %v295
  %360 = vmatpush.msra.mxu0 %v293
  %361 = vmatpush.msra.mxu0 %v291
  %362 = vmatpush.msra.mxu0 %v289
  %363 = vmatpush.msra.mxu0 %v287
  %364 = vmatmul.f32.gmra.mxu0 %v107
  %v365 = vpop.f32.mrf.mxu0
  %v366 = vadd.f32 %v337, %v365
  %367 = vmatmul.f32.gmra.mxu0 %v111
  %v368 = vpop.f32.mrf.mxu0
  %v369 = vadd.f32 %v340, %v368
  %370 = vmatmul.f32.gmra.mxu0 %v115
  %v371 = vpop.f32.mrf.mxu0
  %v372 = vadd.f32 %v343, %v371
  %373 = vmatmul.f32.gmra.mxu0 %v119
  %v374 = vpop.f32.mrf.mxu0
  %v375 = vadd.f32 %v346, %v374
  %376 = vdwg.mxu0
  %377 = vmatpush.msra.mxu0 %v286
  %378 = vmatpush.msra.mxu0 %v284
  %379 = vmatpush.msra.mxu0 %v282
  %380 = vmatpush.msra.mxu0 %v280
  %381 = vmatpush.msra.mxu0 %v278
  %382 = vmatpush.msra.mxu0 %v276
  %383 = vmatpush.msra.mxu0 %v274
  %384 = vmatpush.msra.mxu0 %v272
  %385 = vmatpush.msra.mxu0 %v270
  %386 = vmatpush.msra.mxu0 %v268
  %387 = vmatpush.msra.mxu0 %v266
  %388 = vmatpush.msra.mxu0 %v264
  %389 = vmatpush.msra.mxu0 %v262
  %390 = vmatpush.msra.mxu0 %v260
  %391 = vmatpush.msra.mxu0 %v258
  %392 = vmatpush.msra.mxu0 %v256
  %393 = vmatmul.f32.gmra.mxu0 %v106
  %v394 = vpop.f32.mrf.mxu0
  %v395 = vadd.f32 0.0, %v394
  %396 = vmatmul.f32.gmra.mxu0 %v110
  %v397 = vpop.f32.mrf.mxu0
  %v398 = vadd.f32 0.0, %v397
  %399 = vmatmul.f32.gmra.mxu0 %v114
  %v400 = vpop.f32.mrf.mxu0
  %v401 = vadd.f32 0.0, %v400
  %402 = vmatmul.f32.gmra.mxu0 %v118
  %v403 = vpop.f32.mrf.mxu0
  %v404 = vadd.f32 0.0, %v403
  %405 = vdwg.mxu0
  %406 = vmatpush.msra.mxu0 %v318
  %407 = vmatpush.msra.mxu0 %v316
  %408 = vmatpush.msra.mxu0 %v314
  %409 = vmatpush.msra.mxu0 %v312
  %410 = vmatpush.msra.mxu0 %v310
  %411 = vmatpush.msra.mxu0 %v308
  %412 = vmatpush.msra.mxu0 %v306
  %413 = vmatpush.msra.mxu0 %v304
  %414 = vmatpush.msra.mxu0 %v302
  %415 = vmatpush.msra.mxu0 %v300
  %416 = vmatpush.msra.mxu0 %v298
  %417 = vmatpush.msra.mxu0 %v296
  %418 = vmatpush.msra.mxu0 %v294
  %419 = vmatpush.msra.mxu0 %v292
  %420 = vmatpush.msra.mxu0 %v290
  %421 = vmatpush.msra.mxu0 %v288
  %422 = vmatmul.f32.gmra.mxu0 %v107
  %v423 = vpop.f32.mrf.mxu0
  %v424 = vadd.f32 %v395, %v423
  %425 = vmatmul.f32.gmra.mxu0 %v111
  %v426 = vpop.f32.mrf.mxu0
  %v427 = vadd.f32 %v398, %v426
  %428 = vmatmul.f32.gmra.mxu0 %v115
  %v429 = vpop.f32.mrf.mxu0
  %v430 = vadd.f32 %v401, %v429
  %431 = vmatmul.f32.gmra.mxu0 %v119
  %v432 = vpop.f32.mrf.mxu0
  %v433 = vadd.f32 %v404, %v432
  %434 = vdwg.mxu0
  %435 = vmatpush.msra.mxu0 %v221
  %436 = vmatpush.msra.mxu0 %v219
  %437 = vmatpush.msra.mxu0 %v217
  %438 = vmatpush.msra.mxu0 %v215
  %439 = vmatpush.msra.mxu0 %v213
  %440 = vmatpush.msra.mxu0 %v211
  %441 = vmatpush.msra.mxu0 %v209
  %442 = vmatpush.msra.mxu0 %v207
  %443 = vmatpush.msra.mxu0 %v205
  %444 = vmatpush.msra.mxu0 %v203
  %445 = vmatpush.msra.mxu0 %v201
  %446 = vmatpush.msra.mxu0 %v199
  %447 = vmatpush.msra.mxu0 %v197
  %448 = vmatpush.msra.mxu0 %v195
  %449 = vmatpush.msra.mxu0 %v193
  %450 = vmatpush.msra.mxu0 %v191
  %451 = vmatmul.f32.gmra.mxu0 %v151
  %v452 = vpop.f32.mrf.mxu0
  %v453 = vadd.f32 %v366, %v452
  %454 = vmatmul.f32.gmra.mxu0 %v134
  %v455 = vpop.f32.mrf.mxu0
  %v456 = vadd.f32 %v369, %v455
  %457 = vmatmul.f32.gmra.mxu0 %v153
  %v458 = vpop.f32.mrf.mxu0
  %v459 = vadd.f32 %v372, %v458
  %460 = vmatmul.f32.gmra.mxu0 %v140
  %v461 = vpop.f32.mrf.mxu0
  %v462 = vadd.f32 %v375, %v461
  %463 = vdwg.mxu0
  %464 = vmatpush.msra.mxu0 %v253
  %465 = vmatpush.msra.mxu0 %v251
  %466 = vmatpush.msra.mxu0 %v249
  %467 = vmatpush.msra.mxu0 %v247
  %468 = vmatpush.msra.mxu0 %v245
  %469 = vmatpush.msra.mxu0 %v243
  %470 = vmatpush.msra.mxu0 %v241
  %471 = vmatpush.msra.mxu0 %v239
  %472 = vmatpush.msra.mxu0 %v237
  %473 = vmatpush.msra.mxu0 %v235
  %474 = vmatpush.msra.mxu0 %v233
  %475 = vmatpush.msra.mxu0 %v231
  %476 = vmatpush.msra.mxu0 %v229
  %477 = vmatpush.msra.mxu0 %v227
  %478 = vmatpush.msra.mxu0 %v225
  %479 = vmatpush.msra.mxu0 %v223
  %480 = vmatmul.f32.gmra.mxu0 %v152
  %v481 = vpop.f32.mrf.mxu0
  %v482 = vadd.f32 %v453, %v481
  %483 = vmatmul.f32.gmra.mxu0 %v136
  %v484 = vpop.f32.mrf.mxu0
  %v485 = vadd.f32 %v456, %v484
  %486 = vmatmul.f32.gmra.mxu0 %v154
  %v487 = vpop.f32.mrf.mxu0
  %v488 = vadd.f32 %v459, %v487
  %489 = vmatmul.f32.gmra.mxu0 %v142
  %v490 = vpop.f32.mrf.mxu0
  %v491 = vadd.f32 %v462, %v490
  %492 = vdwg.mxu0
  %493 = vmatpush.msra.mxu0 %v222
  %494 = vmatpush.msra.mxu0 %v220
  %495 = vmatpush.msra.mxu0 %v218
  %496 = vmatpush.msra.mxu0 %v216
  %497 = vmatpush.msra.mxu0 %v214
  %498 = vmatpush.msra.mxu0 %v212
  %499 = vmatpush.msra.mxu0 %v210
  %500 = vmatpush.msra.mxu0 %v208
  %501 = vmatpush.msra.mxu0 %v206
  %502 = vmatpush.msra.mxu0 %v204
  %503 = vmatpush.msra.mxu0 %v202
  %504 = vmatpush.msra.mxu0 %v200
  %505 = vmatpush.msra.mxu0 %v198
  %506 = vmatpush.msra.mxu0 %v196
  %507 = vmatpush.msra.mxu0 %v194
  %508 = vmatpush.msra.mxu0 %v192
  %509 = vmatmul.f32.gmra.mxu0 %v151
  %v510 = vpop.f32.mrf.mxu0
  %v511 = vadd.f32 %v424, %v510
  %512 = vmatmul.f32.gmra.mxu0 %v134
  %v513 = vpop.f32.mrf.mxu0
  %v514 = vadd.f32 %v427, %v513
  %515 = vmatmul.f32.gmra.mxu0 %v153
  %v516 = vpop.f32.mrf.mxu0
  %v517 = vadd.f32 %v430, %v516
  %518 = vmatmul.f32.gmra.mxu0 %v140
  %v519 = vpop.f32.mrf.mxu0
  %v520 = vadd.f32 %v433, %v519
  %521 = vdwg.mxu0
  %522 = vmatpush.msra.mxu0 %v254
  %523 = vmatpush.msra.mxu0 %v252
  %524 = vmatpush.msra.mxu0 %v250
  %525 = vmatpush.msra.mxu0 %v248
  %526 = vmatpush.msra.mxu0 %v246
  %527 = vmatpush.msra.mxu0 %v244
  %528 = vmatpush.msra.mxu0 %v242
  %529 = vmatpush.msra.mxu0 %v240
  %530 = vmatpush.msra.mxu0 %v238
  %531 = vmatpush.msra.mxu0 %v236
  %532 = vmatpush.msra.mxu0 %v234
  %533 = vmatpush.msra.mxu0 %v232
  %534 = vmatpush.msra.mxu0 %v230
  %535 = vmatpush.msra.mxu0 %v228
  %536 = vmatpush.msra.mxu0 %v226
  %537 = vmatpush.msra.mxu0 %v224
  %538 = vmatmul.f32.gmra.mxu0 %v152
  %v539 = vpop.f32.mrf.mxu0
  %v540 = vadd.f32 %v511, %v539
  %541 = vmatmul.f32.gmra.mxu0 %v136
  %v542 = vpop.f32.mrf.mxu0
  %v543 = vadd.f32 %v514, %v542
  %544 = vmatmul.f32.gmra.mxu0 %v154
  %v545 = vpop.f32.mrf.mxu0
  %v546 = vadd.f32 %v517, %v545
  %547 = vmatmul.f32.gmra.mxu0 %v142
  %v548 = vpop.f32.mrf.mxu0
  %v549 = vadd.f32 %v520, %v548
  %550 = vdwg.mxu0
  %v551 = vld [vmem:[%s5] sm:$0xff]
  %v552 = vld [vmem:[%s5 + $0x8] sm:$0xff]
  %v553 = vld [vmem:[%s5 + $0x10] sm:$0xff]
  %v554 = vld [vmem:[%s5 + $0x18] sm:$0xff]
  %v555 = vld [vmem:[%s5 + $0x20] sm:$0xff]
  %v556 = vld [vmem:[%s5 + $0x28] sm:$0xff]
  %v557 = vld [vmem:[%s5 + $0x30] sm:$0xff]
  %v558 = vld [vmem:[%s5 + $0x38] sm:$0xff]
  %v559 = vld [vmem:[%s5 + $0x40] sm:$0xff]
  %v560 = vld [vmem:[%s5 + $0x48] sm:$0xff]
  %v561 = vld [vmem:[%s5 + $0x50] sm:$0xff]
  %v562 = vld [vmem:[%s5 + $0x58] sm:$0xff]
  %v563 = vld [vmem:[%s5 + $0x60] sm:$0xff]
  %v564 = vld [vmem:[%s5 + $0x68] sm:$0xff]
  %v565 = vld [vmem:[%s5 + $0x70] sm:$0xff]
  %v566 = vld [vmem:[%s5 + $0x78] sm:$0xff]
  %v567 = vld [vmem:[%s5 + $0x80] sm:$0xff]
  %v568 = vld [vmem:[%s5 + $0x88] sm:$0xff]
  %v569 = vld [vmem:[%s5 + $0x90] sm:$0xff]
  %v570 = vld [vmem:[%s5 + $0x98] sm:$0xff]
  %v571 = vld [vmem:[%s5 + $0xa0] sm:$0xff]
  %v572 = vld [vmem:[%s5 + $0xa8] sm:$0xff]
  %v573 = vld [vmem:[%s5 + $0xb0] sm:$0xff]
  %v574 = vld [vmem:[%s5 + $0xb8] sm:$0xff]
  %v575 = vld [vmem:[%s5 + $0xc0] sm:$0xff]
  %v576 = vld [vmem:[%s5 + $0xc8] sm:$0xff]
  %v577 = vld [vmem:[%s5 + $0xd0] sm:$0xff]
  %v578 = vld [vmem:[%s5 + $0xd8] sm:$0xff]
  %v579 = vld [vmem:[%s5 + $0xe0] sm:$0xff]
  %v580 = vld [vmem:[%s5 + $0xe8] sm:$0xff]
  %v581 = vld [vmem:[%s5 + $0xf0] sm:$0xff]
  %v582 = vld [vmem:[%s5 + $0xf8] sm:$0xff]
  %v583 = vld [vmem:[%s5 + $0x100] sm:$0xff]
  %v584 = vld [vmem:[%s5 + $0x108] sm:$0xff]
  %v585 = vld [vmem:[%s5 + $0x110] sm:$0xff]
  %v586 = vld [vmem:[%s5 + $0x118] sm:$0xff]
  %v587 = vld [vmem:[%s5 + $0x120] sm:$0xff]
  %v588 = vld [vmem:[%s5 + $0x128] sm:$0xff]
  %v589 = vld [vmem:[%s5 + $0x130] sm:$0xff]
  %v590 = vld [vmem:[%s5 + $0x138] sm:$0xff]
  %v591 = vld [vmem:[%s5 + $0x140] sm:$0xff]
  %v592 = vld [vmem:[%s5 + $0x148] sm:$0xff]
  %v593 = vld [vmem:[%s5 + $0x150] sm:$0xff]
  %v594 = vld [vmem:[%s5 + $0x158] sm:$0xff]
  %v595 = vld [vmem:[%s5 + $0x160] sm:$0xff]
  %v596 = vld [vmem:[%s5 + $0x168] sm:$0xff]
  %v597 = vld [vmem:[%s5 + $0x170] sm:$0xff]
  %v598 = vld [vmem:[%s5 + $0x178] sm:$0xff]
  %v599 = vld [vmem:[%s5 + $0x180] sm:$0xff]
  %v600 = vld [vmem:[%s5 + $0x188] sm:$0xff]
  %v601 = vld [vmem:[%s5 + $0x190] sm:$0xff]
  %v602 = vld [vmem:[%s5 + $0x198] sm:$0xff]
  %v603 = vld [vmem:[%s5 + $0x1a0] sm:$0xff]
  %v604 = vld [vmem:[%s5 + $0x1a8] sm:$0xff]
  %v605 = vld [vmem:[%s5 + $0x1b0] sm:$0xff]
  %v606 = vld [vmem:[%s5 + $0x1b8] sm:$0xff]
  %v607 = vld [vmem:[%s5 + $0x1c0] sm:$0xff]
  %v608 = vld [vmem:[%s5 + $0x1c8] sm:$0xff]
  %v609 = vld [vmem:[%s5 + $0x1d0] sm:$0xff]
  %v610 = vld [vmem:[%s5 + $0x1d8] sm:$0xff]
  %v611 = vld [vmem:[%s5 + $0x1e0] sm:$0xff]
  %v612 = vld [vmem:[%s5 + $0x1e8] sm:$0xff]
  %v613 = vld [vmem:[%s5 + $0x1f0] sm:$0xff]
  %v614 = vld [vmem:[%s5 + $0x1f8] sm:$0xff]
  %615 = vmatpush.msra.mxu0 %v581
  %616 = vmatpush.msra.mxu0 %v579
  %617 = vmatpush.msra.mxu0 %v577
  %618 = vmatpush.msra.mxu0 %v575
  %619 = vmatpush.msra.mxu0 %v573
  %620 = vmatpush.msra.mxu0 %v571
  %621 = vmatpush.msra.mxu0 %v569
  %622 = vmatpush.msra.mxu0 %v567
  %623 = vmatpush.msra.mxu0 %v565
  %624 = vmatpush.msra.mxu0 %v563
  %625 = vmatpush.msra.mxu0 %v561
  %626 = vmatpush.msra.mxu0 %v559
  %627 = vmatpush.msra.mxu0 %v557
  %628 = vmatpush.msra.mxu0 %v555
  %629 = vmatpush.msra.mxu0 %v553
  %630 = vmatpush.msra.mxu0 %v551
  %631 = vmatmul.f32.gmra.mxu0 %v108
  %v632 = vpop.f32.mrf.mxu0
  %v633 = vadd.f32 0.0, %v632
  %634 = vmatmul.f32.gmra.mxu0 %v112
  %v635 = vpop.f32.mrf.mxu0
  %v636 = vadd.f32 0.0, %v635
  %637 = vmatmul.f32.gmra.mxu0 %v116
  %v638 = vpop.f32.mrf.mxu0
  %v639 = vadd.f32 0.0, %v638
  %640 = vmatmul.f32.gmra.mxu0 %v120
  %v641 = vpop.f32.mrf.mxu0
  %v642 = vadd.f32 0.0, %v641
  %643 = vdwg.mxu0
  %644 = vmatpush.msra.mxu0 %v613
  %645 = vmatpush.msra.mxu0 %v611
  %646 = vmatpush.msra.mxu0 %v609
  %647 = vmatpush.msra.mxu0 %v607
  %648 = vmatpush.msra.mxu0 %v605
  %649 = vmatpush.msra.mxu0 %v603
  %650 = vmatpush.msra.mxu0 %v601
  %651 = vmatpush.msra.mxu0 %v599
  %652 = vmatpush.msra.mxu0 %v597
  %653 = vmatpush.msra.mxu0 %v595
  %654 = vmatpush.msra.mxu0 %v593
  %655 = vmatpush.msra.mxu0 %v591
  %656 = vmatpush.msra.mxu0 %v589
  %657 = vmatpush.msra.mxu0 %v587
  %658 = vmatpush.msra.mxu0 %v585
  %659 = vmatpush.msra.mxu0 %v583
  %660 = vmatmul.f32.gmra.mxu0 %v109
  %v661 = vpop.f32.mrf.mxu0
  %v662 = vadd.f32 %v633, %v661
  %663 = vmatmul.f32.gmra.mxu0 %v113
  %v664 = vpop.f32.mrf.mxu0
  %v665 = vadd.f32 %v636, %v664
  %666 = vmatmul.f32.gmra.mxu0 %v117
  %v667 = vpop.f32.mrf.mxu0
  %v668 = vadd.f32 %v639, %v667
  %669 = vmatmul.f32.gmra.mxu0 %v121
  %v670 = vpop.f32.mrf.mxu0
  %v671 = vadd.f32 %v642, %v670
  %672 = vdwg.mxu0
  %673 = vmatpush.msra.mxu0 %v582
  %674 = vmatpush.msra.mxu0 %v580
  %675 = vmatpush.msra.mxu0 %v578
  %676 = vmatpush.msra.mxu0 %v576
  %677 = vmatpush.msra.mxu0 %v574
  %678 = vmatpush.msra.mxu0 %v572
  %679 = vmatpush.msra.mxu0 %v570
  %680 = vmatpush.msra.mxu0 %v568
  %681 = vmatpush.msra.mxu0 %v566
  %682 = vmatpush.msra.mxu0 %v564
  %683 = vmatpush.msra.mxu0 %v562
  %684 = vmatpush.msra.mxu0 %v560
  %685 = vmatpush.msra.mxu0 %v558
  %686 = vmatpush.msra.mxu0 %v556
  %687 = vmatpush.msra.mxu0 %v554
  %688 = vmatpush.msra.mxu0 %v552
  %689 = vmatmul.f32.gmra.mxu0 %v108
  %v690 = vpop.f32.mrf.mxu0
  %v691 = vadd.f32 0.0, %v690
  %692 = vmatmul.f32.gmra.mxu0 %v112
  %v693 = vpop.f32.mrf.mxu0
  %v694 = vadd.f32 0.0, %v693
  %695 = vmatmul.f32.gmra.mxu0 %v116
  %v696 = vpop.f32.mrf.mxu0
  %v697 = vadd.f32 0.0, %v696
  %698 = vmatmul.f32.gmra.mxu0 %v120
  %v699 = vpop.f32.mrf.mxu0
  %v700 = vadd.f32 0.0, %v699
  %701 = vdwg.mxu0
  %702 = vmatpush.msra.mxu0 %v614
  %703 = vmatpush.msra.mxu0 %v612
  %704 = vmatpush.msra.mxu0 %v610
  %705 = vmatpush.msra.mxu0 %v608
  %706 = vmatpush.msra.mxu0 %v606
  %707 = vmatpush.msra.mxu0 %v604
  %708 = vmatpush.msra.mxu0 %v602
  %709 = vmatpush.msra.mxu0 %v600
  %710 = vmatpush.msra.mxu0 %v598
  %711 = vmatpush.msra.mxu0 %v596
  %712 = vmatpush.msra.mxu0 %v594
  %713 = vmatpush.msra.mxu0 %v592
  %714 = vmatpush.msra.mxu0 %v590
  %715 = vmatpush.msra.mxu0 %v588
  %716 = vmatpush.msra.mxu0 %v586
  %717 = vmatpush.msra.mxu0 %v584
  %718 = vmatmul.f32.gmra.mxu0 %v109
  %v719 = vpop.f32.mrf.mxu0
  %v720 = vadd.f32 %v691, %v719
  %721 = vmatmul.f32.gmra.mxu0 %v113
  %v722 = vpop.f32.mrf.mxu0
  %v723 = vadd.f32 %v694, %v722
  %724 = vmatmul.f32.gmra.mxu0 %v117
  %v725 = vpop.f32.mrf.mxu0
  %v726 = vadd.f32 %v697, %v725
  %727 = vmatmul.f32.gmra.mxu0 %v121
  %v728 = vpop.f32.mrf.mxu0
  %v729 = vadd.f32 %v700, %v728
  %730 = vdwg.mxu0
  %v731 = vadd.f32 %v482, %v662
  %v732 = vadd.f32 %v540, %v720
  %v733 = vadd.f32 %v485, %v665
  %v734 = vadd.f32 %v543, %v723
  %v735 = vadd.f32 %v488, %v668
  %v736 = vadd.f32 %v546, %v726
  %v737 = vadd.f32 %v491, %v671
  %v738 = vadd.f32 %v549, %v729
  %v740 = vperm.slane %v188, 0
  %v741 = vperm.slane %v188, 1
  %v744 = vadd.f32 %v731, %v740
  %v745 = vadd.f32 %v732, %v741
  %v746 = vadd.f32 %v733, %v740
  %v747 = vadd.f32 %v734, %v741
  %v748 = vadd.f32 %v735, %v740
  %v749 = vadd.f32 %v736, %v741
  %v750 = vadd.f32 %v737, %v740
  %v751 = vadd.f32 %v738, %v741
  %752 = vmatpush.msra.mxu0 %v285
  %753 = vmatpush.msra.mxu0 %v283
  %754 = vmatpush.msra.mxu0 %v281
  %755 = vmatpush.msra.mxu0 %v279
  %756 = vmatpush.msra.mxu0 %v277
  %757 = vmatpush.msra.mxu0 %v275
  %758 = vmatpush.msra.mxu0 %v273
  %759 = vmatpush.msra.mxu0 %v271
  %760 = vmatpush.msra.mxu0 %v269
  %761 = vmatpush.msra.mxu0 %v267
  %762 = vmatpush.msra.mxu0 %v265
  %763 = vmatpush.msra.mxu0 %v263
  %764 = vmatpush.msra.mxu0 %v261
  %765 = vmatpush.msra.mxu0 %v259
  %766 = vmatpush.msra.mxu0 %v257
  %767 = vmatpush.msra.mxu0 %v255
  %768 = vmatmul.f32.gmra.mxu0 %v108
  %v769 = vpop.f32.mrf.mxu0
  %v770 = vadd.f32 0.0, %v769
  %771 = vmatmul.f32.gmra.mxu0 %v112
  %v772 = vpop.f32.mrf.mxu0
  %v773 = vadd.f32 0.0, %v772
  %774 = vmatmul.f32.gmra.mxu0 %v116
  %v775 = vpop.f32.mrf.mxu0
  %v776 = vadd.f32 0.0, %v775
  %777 = vmatmul.f32.gmra.mxu0 %v120
  %v778 = vpop.f32.mrf.mxu0
  %v779 = vadd.f32 0.0, %v778
  %780 = vdwg.mxu0
  %781 = vmatpush.msra.mxu0 %v317
  %782 = vmatpush.msra.mxu0 %v315
  %783 = vmatpush.msra.mxu0 %v313
  %784 = vmatpush.msra.mxu0 %v311
  %785 = vmatpush.msra.mxu0 %v309
  %786 = vmatpush.msra.mxu0 %v307
  %787 = vmatpush.msra.mxu0 %v305
  %788 = vmatpush.msra.mxu0 %v303
  %789 = vmatpush.msra.mxu0 %v301
  %790 = vmatpush.msra.mxu0 %v299
  %791 = vmatpush.msra.mxu0 %v297
  %792 = vmatpush.msra.mxu0 %v295
  %793 = vmatpush.msra.mxu0 %v293
  %794 = vmatpush.msra.mxu0 %v291
  %795 = vmatpush.msra.mxu0 %v289
  %796 = vmatpush.msra.mxu0 %v287
  %797 = vmatmul.f32.gmra.mxu0 %v109
  %v798 = vpop.f32.mrf.mxu0
  %v799 = vadd.f32 %v770, %v798
  %800 = vmatmul.f32.gmra.mxu0 %v113
  %v801 = vpop.f32.mrf.mxu0
  %v802 = vadd.f32 %v773, %v801
  %803 = vmatmul.f32.gmra.mxu0 %v117
  %v804 = vpop.f32.mrf.mxu0
  %v805 = vadd.f32 %v776, %v804
  %806 = vmatmul.f32.gmra.mxu0 %v121
  %v807 = vpop.f32.mrf.mxu0
  %v808 = vadd.f32 %v779, %v807
  %809 = vdwg.mxu0
  %810 = vmatpush.msra.mxu0 %v286
  %811 = vmatpush.msra.mxu0 %v284
  %812 = vmatpush.msra.mxu0 %v282
  %813 = vmatpush.msra.mxu0 %v280
  %814 = vmatpush.msra.mxu0 %v278
  %815 = vmatpush.msra.mxu0 %v276
  %816 = vmatpush.msra.mxu0 %v274
  %817 = vmatpush.msra.mxu0 %v272
  %818 = vmatpush.msra.mxu0 %v270
  %819 = vmatpush.msra.mxu0 %v268
  %820 = vmatpush.msra.mxu0 %v266
  %821 = vmatpush.msra.mxu0 %v264
  %822 = vmatpush.msra.mxu0 %v262
  %823 = vmatpush.msra.mxu0 %v260
  %824 = vmatpush.msra.mxu0 %v258
  %825 = vmatpush.msra.mxu0 %v256
  %826 = vmatmul.f32.gmra.mxu0 %v108
  %v827 = vpop.f32.mrf.mxu0
  %v828 = vadd.f32 0.0, %v827
  %829 = vmatmul.f32.gmra.mxu0 %v112
  %v830 = vpop.f32.mrf.mxu0
  %v831 = vadd.f32 0.0, %v830
  %832 = vmatmul.f32.gmra.mxu0 %v116
  %v833 = vpop.f32.mrf.mxu0
  %v834 = vadd.f32 0.0, %v833
  %835 = vmatmul.f32.gmra.mxu0 %v120
  %v836 = vpop.f32.mrf.mxu0
  %v837 = vadd.f32 0.0, %v836
  %838 = vdwg.mxu0
  %839 = vmatpush.msra.mxu0 %v318
  %840 = vmatpush.msra.mxu0 %v316
  %841 = vmatpush.msra.mxu0 %v314
  %842 = vmatpush.msra.mxu0 %v312
  %843 = vmatpush.msra.mxu0 %v310
  %844 = vmatpush.msra.mxu0 %v308
  %845 = vmatpush.msra.mxu0 %v306
  %846 = vmatpush.msra.mxu0 %v304
  %847 = vmatpush.msra.mxu0 %v302
  %848 = vmatpush.msra.mxu0 %v300
  %849 = vmatpush.msra.mxu0 %v298
  %850 = vmatpush.msra.mxu0 %v296
  %851 = vmatpush.msra.mxu0 %v294
  %852 = vmatpush.msra.mxu0 %v292
  %853 = vmatpush.msra.mxu0 %v290
  %854 = vmatpush.msra.mxu0 %v288
  %855 = vmatmul.f32.gmra.mxu0 %v109
  %v856 = vpop.f32.mrf.mxu0
  %v857 = vadd.f32 %v828, %v856
  %858 = vmatmul.f32.gmra.mxu0 %v113
  %v859 = vpop.f32.mrf.mxu0
  %v860 = vadd.f32 %v831, %v859
  %861 = vmatmul.f32.gmra.mxu0 %v117
  %v862 = vpop.f32.mrf.mxu0
  %v863 = vadd.f32 %v834, %v862
  %864 = vmatmul.f32.gmra.mxu0 %v121
  %v865 = vpop.f32.mrf.mxu0
  %v866 = vadd.f32 %v837, %v865
  %867 = vdwg.mxu0
  %868 = vmatpush.msra.mxu0 %v221
  %869 = vmatpush.msra.mxu0 %v219
  %870 = vmatpush.msra.mxu0 %v217
  %871 = vmatpush.msra.mxu0 %v215
  %872 = vmatpush.msra.mxu0 %v213
  %873 = vmatpush.msra.mxu0 %v211
  %874 = vmatpush.msra.mxu0 %v209
  %875 = vmatpush.msra.mxu0 %v207
  %876 = vmatpush.msra.mxu0 %v205
  %877 = vmatpush.msra.mxu0 %v203
  %878 = vmatpush.msra.mxu0 %v201
  %879 = vmatpush.msra.mxu0 %v199
  %880 = vmatpush.msra.mxu0 %v197
  %881 = vmatpush.msra.mxu0 %v195
  %882 = vmatpush.msra.mxu0 %v193
  %883 = vmatpush.msra.mxu0 %v191
  %884 = vmatmul.f32.gmra.mxu0 %v106
  %v885 = vpop.f32.mrf.mxu0
  %v886 = vadd.f32 %v799, %v885
  %887 = vmatmul.f32.gmra.mxu0 %v110
  %v888 = vpop.f32.mrf.mxu0
  %v889 = vadd.f32 %v802, %v888
  %890 = vmatmul.f32.gmra.mxu0 %v114
  %v891 = vpop.f32.mrf.mxu0
  %v892 = vadd.f32 %v805, %v891
  %893 = vmatmul.f32.gmra.mxu0 %v118
  %v894 = vpop.f32.mrf.mxu0
  %v895 = vadd.f32 %v808, %v894
  %896 = vdwg.mxu0
  %897 = vmatpush.msra.mxu0 %v253
  %898 = vmatpush.msra.mxu0 %v251
  %899 = vmatpush.msra.mxu0 %v249
  %900 = vmatpush.msra.mxu0 %v247
  %901 = vmatpush.msra.mxu0 %v245
  %902 = vmatpush.msra.mxu0 %v243
  %903 = vmatpush.msra.mxu0 %v241
  %904 = vmatpush.msra.mxu0 %v239
  %905 = vmatpush.msra.mxu0 %v237
  %906 = vmatpush.msra.mxu0 %v235
  %907 = vmatpush.msra.mxu0 %v233
  %908 = vmatpush.msra.mxu0 %v231
  %909 = vmatpush.msra.mxu0 %v229
  %910 = vmatpush.msra.mxu0 %v227
  %911 = vmatpush.msra.mxu0 %v225
  %912 = vmatpush.msra.mxu0 %v223
  %913 = vmatmul.f32.gmra.mxu0 %v107
  %v914 = vpop.f32.mrf.mxu0
  %v915 = vadd.f32 %v886, %v914
  %916 = vmatmul.f32.gmra.mxu0 %v111
  %v917 = vpop.f32.mrf.mxu0
  %v918 = vadd.f32 %v889, %v917
  %919 = vmatmul.f32.gmra.mxu0 %v115
  %v920 = vpop.f32.mrf.mxu0
  %v921 = vadd.f32 %v892, %v920
  %922 = vmatmul.f32.gmra.mxu0 %v119
  %v923 = vpop.f32.mrf.mxu0
  %v924 = vadd.f32 %v895, %v923
  %925 = vdwg.mxu0
  %926 = vmatpush.msra.mxu0 %v222
  %927 = vmatpush.msra.mxu0 %v220
  %928 = vmatpush.msra.mxu0 %v218
  %929 = vmatpush.msra.mxu0 %v216
  %930 = vmatpush.msra.mxu0 %v214
  %931 = vmatpush.msra.mxu0 %v212
  %932 = vmatpush.msra.mxu0 %v210
  %933 = vmatpush.msra.mxu0 %v208
  %934 = vmatpush.msra.mxu0 %v206
  %935 = vmatpush.msra.mxu0 %v204
  %936 = vmatpush.msra.mxu0 %v202
  %937 = vmatpush.msra.mxu0 %v200
  %938 = vmatpush.msra.mxu0 %v198
  %939 = vmatpush.msra.mxu0 %v196
  %940 = vmatpush.msra.mxu0 %v194
  %941 = vmatpush.msra.mxu0 %v192
  %942 = vmatmul.f32.gmra.mxu0 %v106
  %v943 = vpop.f32.mrf.mxu0
  %v944 = vadd.f32 %v857, %v943
  %945 = vmatmul.f32.gmra.mxu0 %v110
  %v946 = vpop.f32.mrf.mxu0
  %v947 = vadd.f32 %v860, %v946
  %948 = vmatmul.f32.gmra.mxu0 %v114
  %v949 = vpop.f32.mrf.mxu0
  %v950 = vadd.f32 %v863, %v949
  %951 = vmatmul.f32.gmra.mxu0 %v118
  %v952 = vpop.f32.mrf.mxu0
  %v953 = vadd.f32 %v866, %v952
  %954 = vdwg.mxu0
  %955 = vmatpush.msra.mxu0 %v254
  %956 = vmatpush.msra.mxu0 %v252
  %957 = vmatpush.msra.mxu0 %v250
  %958 = vmatpush.msra.mxu0 %v248
  %959 = vmatpush.msra.mxu0 %v246
  %960 = vmatpush.msra.mxu0 %v244
  %961 = vmatpush.msra.mxu0 %v242
  %962 = vmatpush.msra.mxu0 %v240
  %963 = vmatpush.msra.mxu0 %v238
  %964 = vmatpush.msra.mxu0 %v236
  %965 = vmatpush.msra.mxu0 %v234
  %966 = vmatpush.msra.mxu0 %v232
  %967 = vmatpush.msra.mxu0 %v230
  %968 = vmatpush.msra.mxu0 %v228
  %969 = vmatpush.msra.mxu0 %v226
  %970 = vmatpush.msra.mxu0 %v224
  %971 = vmatmul.f32.gmra.mxu0 %v107
  %v972 = vpop.f32.mrf.mxu0
  %v973 = vadd.f32 %v944, %v972
  %974 = vmatmul.f32.gmra.mxu0 %v111
  %v975 = vpop.f32.mrf.mxu0
  %v976 = vadd.f32 %v947, %v975
  %977 = vmatmul.f32.gmra.mxu0 %v115
  %v978 = vpop.f32.mrf.mxu0
  %v979 = vadd.f32 %v950, %v978
  %980 = vmatmul.f32.gmra.mxu0 %v119
  %v981 = vpop.f32.mrf.mxu0
  %v982 = vadd.f32 %v953, %v981
  %983 = vdwg.mxu0
  %984 = vmatpush.msra.mxu0 %v581
  %985 = vmatpush.msra.mxu0 %v579
  %986 = vmatpush.msra.mxu0 %v577
  %987 = vmatpush.msra.mxu0 %v575
  %988 = vmatpush.msra.mxu0 %v573
  %989 = vmatpush.msra.mxu0 %v571
  %990 = vmatpush.msra.mxu0 %v569
  %991 = vmatpush.msra.mxu0 %v567
  %992 = vmatpush.msra.mxu0 %v565
  %993 = vmatpush.msra.mxu0 %v563
  %994 = vmatpush.msra.mxu0 %v561
  %995 = vmatpush.msra.mxu0 %v559
  %996 = vmatpush.msra.mxu0 %v557
  %997 = vmatpush.msra.mxu0 %v555
  %998 = vmatpush.msra.mxu0 %v553
  %999 = vmatpush.msra.mxu0 %v551
  %1000 = vmatmul.f32.gmra.mxu0 %v166
  %v1001 = vpop.f32.mrf.mxu0
  %v1002 = vadd.f32 0.0, %v1001
  %1003 = vmatmul.f32.gmra.mxu0 %v184
  %v1004 = vpop.f32.mrf.mxu0
  %v1005 = vadd.f32 0.0, %v1004
  %1006 = vmatmul.f32.gmra.mxu0 %v172
  %v1007 = vpop.f32.mrf.mxu0
  %v1008 = vadd.f32 0.0, %v1007
  %1009 = vmatmul.f32.gmra.mxu0 %v186
  %v1010 = vpop.f32.mrf.mxu0
  %v1011 = vadd.f32 0.0, %v1010
  %1012 = vdwg.mxu0
  %1013 = vmatpush.msra.mxu0 %v613
  %1014 = vmatpush.msra.mxu0 %v611
  %1015 = vmatpush.msra.mxu0 %v609
  %1016 = vmatpush.msra.mxu0 %v607
  %1017 = vmatpush.msra.mxu0 %v605
  %1018 = vmatpush.msra.mxu0 %v603
  %1019 = vmatpush.msra.mxu0 %v601
  %1020 = vmatpush.msra.mxu0 %v599
  %1021 = vmatpush.msra.mxu0 %v597
  %1022 = vmatpush.msra.mxu0 %v595
  %1023 = vmatpush.msra.mxu0 %v593
  %1024 = vmatpush.msra.mxu0 %v591
  %1025 = vmatpush.msra.mxu0 %v589
  %1026 = vmatpush.msra.mxu0 %v587
  %1027 = vmatpush.msra.mxu0 %v585
  %1028 = vmatpush.msra.mxu0 %v583
  %1029 = vmatmul.f32.gmra.mxu0 %v169
  %v1030 = vpop.f32.mrf.mxu0
  %v1031 = vadd.f32 %v1002, %v1030
  %1032 = vmatmul.f32.gmra.mxu0 %v185
  %v1033 = vpop.f32.mrf.mxu0
  %v1034 = vadd.f32 %v1005, %v1033
  %1035 = vmatmul.f32.gmra.mxu0 %v175
  %v1036 = vpop.f32.mrf.mxu0
  %v1037 = vadd.f32 %v1008, %v1036
  %1038 = vmatmul.f32.gmra.mxu0 %v187
  %v1039 = vpop.f32.mrf.mxu0
  %v1040 = vadd.f32 %v1011, %v1039
  %1041 = vdwg.mxu0
  %1042 = vmatpush.msra.mxu0 %v582
  %1043 = vmatpush.msra.mxu0 %v580
  %1044 = vmatpush.msra.mxu0 %v578
  %1045 = vmatpush.msra.mxu0 %v576
  %1046 = vmatpush.msra.mxu0 %v574
  %1047 = vmatpush.msra.mxu0 %v572
  %1048 = vmatpush.msra.mxu0 %v570
  %1049 = vmatpush.msra.mxu0 %v568
  %1050 = vmatpush.msra.mxu0 %v566
  %1051 = vmatpush.msra.mxu0 %v564
  %1052 = vmatpush.msra.mxu0 %v562
  %1053 = vmatpush.msra.mxu0 %v560
  %1054 = vmatpush.msra.mxu0 %v558
  %1055 = vmatpush.msra.mxu0 %v556
  %1056 = vmatpush.msra.mxu0 %v554
  %1057 = vmatpush.msra.mxu0 %v552
  %1058 = vmatmul.f32.gmra.mxu0 %v166
  %v1059 = vpop.f32.mrf.mxu0
  %v1060 = vadd.f32 0.0, %v1059
  %1061 = vmatmul.f32.gmra.mxu0 %v184
  %v1062 = vpop.f32.mrf.mxu0
  %v1063 = vadd.f32 0.0, %v1062
  %1064 = vmatmul.f32.gmra.mxu0 %v172
  %v1065 = vpop.f32.mrf.mxu0
  %v1066 = vadd.f32 0.0, %v1065
  %1067 = vmatmul.f32.gmra.mxu0 %v186
  %v1068 = vpop.f32.mrf.mxu0
  %v1069 = vadd.f32 0.0, %v1068
  %1070 = vdwg.mxu0
  %1071 = vmatpush.msra.mxu0 %v614
  %1072 = vmatpush.msra.mxu0 %v612
  %1073 = vmatpush.msra.mxu0 %v610
  %1074 = vmatpush.msra.mxu0 %v608
  %1075 = vmatpush.msra.mxu0 %v606
  %1076 = vmatpush.msra.mxu0 %v604
  %1077 = vmatpush.msra.mxu0 %v602
  %1078 = vmatpush.msra.mxu0 %v600
  %1079 = vmatpush.msra.mxu0 %v598
  %1080 = vmatpush.msra.mxu0 %v596
  %1081 = vmatpush.msra.mxu0 %v594
  %1082 = vmatpush.msra.mxu0 %v592
  %1083 = vmatpush.msra.mxu0 %v590
  %1084 = vmatpush.msra.mxu0 %v588
  %1085 = vmatpush.msra.mxu0 %v586
  %1086 = vmatpush.msra.mxu0 %v584
  %1087 = vmatmul.f32.gmra.mxu0 %v169
  %v1088 = vpop.f32.mrf.mxu0
  %v1089 = vadd.f32 %v1060, %v1088
  %1090 = vmatmul.f32.gmra.mxu0 %v185
  %v1091 = vpop.f32.mrf.mxu0
  %v1092 = vadd.f32 %v1063, %v1091
  %1093 = vmatmul.f32.gmra.mxu0 %v175
  %v1094 = vpop.f32.mrf.mxu0
  %v1095 = vadd.f32 %v1066, %v1094
  %1096 = vmatmul.f32.gmra.mxu0 %v187
  %v1097 = vpop.f32.mrf.mxu0
  %v1098 = vadd.f32 %v1069, %v1097
  %1099 = vdwg.mxu0
  %v1100 = vadd.f32 %v915, %v1031
  %v1101 = vadd.f32 %v973, %v1089
  %v1102 = vadd.f32 %v918, %v1034
  %v1103 = vadd.f32 %v976, %v1092
  %v1104 = vadd.f32 %v921, %v1037
  %v1105 = vadd.f32 %v979, %v1095
  %v1106 = vadd.f32 %v924, %v1040
  %v1107 = vadd.f32 %v982, %v1098
  %v1108 = vadd.f32 %v1100, %v740
  %v1109 = vadd.f32 %v1101, %v741
  %v1110 = vadd.f32 %v1102, %v740
  %v1111 = vadd.f32 %v1103, %v741
  %v1112 = vadd.f32 %v1104, %v740
  %v1113 = vadd.f32 %v1105, %v741
  %v1114 = vadd.f32 %v1106, %v740
  %v1115 = vadd.f32 %v1107, %v741
  %v1116 = vld [vmem:[%s1] sm:$0xff]
  %v1117 = vld [vmem:[%s1 + $0x8] sm:$0xff]
  %v1118 = vld [vmem:[%s1 + $0x10] sm:$0xff]
  %v1119 = vld [vmem:[%s1 + $0x18] sm:$0xff]
  %v1120 = vld [vmem:[%s7] sm:$0xff]
  %v1121 = vld [vmem:[%s7 + $0x8] sm:$0xff]
  %v1122 = vld [vmem:[%s7 + $0x10] sm:$0xff]
  %v1123 = vld [vmem:[%s7 + $0x18] sm:$0xff]
  %v1124 = vld [vmem:[%s7 + $0x20] sm:$0xff]
  %v1125 = vld [vmem:[%s7 + $0x28] sm:$0xff]
  %v1126 = vld [vmem:[%s7 + $0x30] sm:$0xff]
  %v1127 = vld [vmem:[%s7 + $0x38] sm:$0xff]
  %v1128 = vld [vmem:[%s7 + $0x40] sm:$0xff]
  %v1129 = vld [vmem:[%s7 + $0x48] sm:$0xff]
  %v1130 = vld [vmem:[%s7 + $0x50] sm:$0xff]
  %v1131 = vld [vmem:[%s7 + $0x58] sm:$0xff]
  %v1132 = vld [vmem:[%s7 + $0x60] sm:$0xff]
  %v1133 = vld [vmem:[%s7 + $0x68] sm:$0xff]
  %v1134 = vld [vmem:[%s7 + $0x70] sm:$0xff]
  %v1135 = vld [vmem:[%s7 + $0x78] sm:$0xff]
  %v1137 = vperm.slane %v190, 0
  %v1138 = vperm.slane %v190, 1
  %vm1141 = vcmask 523264
  %v1143 = vsel %vm1141, %v1116, 0
  %v1146 = vsel %vm1141, %v1117, 0
  %v1149 = vsel %vm1141, %v1118, 0
  %v1152 = vsel %vm1141, %v1119, 0
  %1154 = vmatpush.msra.mxu0 0.0
  %1155 = vmatpush.msra.mxu0 0.0
  %1156 = vmatpush.msra.mxu0 0.0
  %1157 = vmatpush.msra.mxu0 0.0
  %1158 = vmatpush.msra.mxu0 0.0
  %1159 = vmatpush.msra.mxu0 0.0
  %1160 = vmatpush.msra.mxu0 0.0
  %1161 = vmatpush.msra.mxu0 0.0
  %1162 = vmatpush.msra.mxu0 %v1134
  %1163 = vmatpush.msra.mxu0 %v1132
  %1164 = vmatpush.msra.mxu0 %v1130
  %1165 = vmatpush.msra.mxu0 %v1128
  %1166 = vmatpush.msra.mxu0 %v1126
  %1167 = vmatpush.msra.mxu0 %v1124
  %1168 = vmatpush.msra.mxu0 %v1122
  %1169 = vmatpush.msra.mxu0 %v1120
  %1170 = vmatmul.f32.gmra.mxu0 %v1143
  %v1171 = vpop.f32.mrf.mxu0
  %v1172 = vadd.f32 %v1137, %v1171
  %1173 = vmatmul.f32.gmra.mxu0 %v1146
  %v1174 = vpop.f32.mrf.mxu0
  %v1175 = vadd.f32 %v1137, %v1174
  %1176 = vmatmul.f32.gmra.mxu0 %v1149
  %v1177 = vpop.f32.mrf.mxu0
  %v1178 = vadd.f32 %v1137, %v1177
  %1179 = vmatmul.f32.gmra.mxu0 %v1152
  %v1180 = vpop.f32.mrf.mxu0
  %v1181 = vadd.f32 %v1137, %v1180
  %1182 = vdwg.mxu0
  %1183 = vmatpush.msra.mxu0 0.0
  %1184 = vmatpush.msra.mxu0 0.0
  %1185 = vmatpush.msra.mxu0 0.0
  %1186 = vmatpush.msra.mxu0 0.0
  %1187 = vmatpush.msra.mxu0 0.0
  %1188 = vmatpush.msra.mxu0 0.0
  %1189 = vmatpush.msra.mxu0 0.0
  %1190 = vmatpush.msra.mxu0 0.0
  %1191 = vmatpush.msra.mxu0 %v1135
  %1192 = vmatpush.msra.mxu0 %v1133
  %1193 = vmatpush.msra.mxu0 %v1131
  %1194 = vmatpush.msra.mxu0 %v1129
  %1195 = vmatpush.msra.mxu0 %v1127
  %1196 = vmatpush.msra.mxu0 %v1125
  %1197 = vmatpush.msra.mxu0 %v1123
  %1198 = vmatpush.msra.mxu0 %v1121
  %1199 = vmatmul.f32.gmra.mxu0 %v1143
  %v1200 = vpop.f32.mrf.mxu0
  %v1201 = vadd.f32 %v1138, %v1200
  %1202 = vmatmul.f32.gmra.mxu0 %v1146
  %v1203 = vpop.f32.mrf.mxu0
  %v1204 = vadd.f32 %v1138, %v1203
  %1205 = vmatmul.f32.gmra.mxu0 %v1149
  %v1206 = vpop.f32.mrf.mxu0
  %v1207 = vadd.f32 %v1138, %v1206
  %1208 = vmatmul.f32.gmra.mxu0 %v1152
  %v1209 = vpop.f32.mrf.mxu0
  %v1210 = vadd.f32 %v1138, %v1209
  %1211 = vdwg.mxu0
  %v1212 = vadd.f32 %v744, %v1172
  %v1213 = vadd.f32 %v745, %v1201
  %v1214 = vadd.f32 %v746, %v1175
  %v1215 = vadd.f32 %v747, %v1204
  %v1216 = vadd.f32 %v748, %v1178
  %v1217 = vadd.f32 %v749, %v1207
  %v1218 = vadd.f32 %v750, %v1181
  %v1219 = vadd.f32 %v751, %v1210
  %1220 = vst [vmem:[%s8] sm:$0xff] %v1212
  %1221 = vst [vmem:[%s8 + $0x8] sm:$0xff] %v1213
  %1222 = vst [vmem:[%s8 + $0x20] sm:$0xff] %v1214
  %1223 = vst [vmem:[%s8 + $0x28] sm:$0xff] %v1215
  %1224 = vst [vmem:[%s8 + $0x40] sm:$0xff] %v1216
  %1225 = vst [vmem:[%s8 + $0x48] sm:$0xff] %v1217
  %1226 = vst [vmem:[%s8 + $0x60] sm:$0xff] %v1218
  %1227 = vst [vmem:[%s8 + $0x68] sm:$0xff] %v1219
  %v1228 = vadd.f32 %v1108, %v1172
  %v1229 = vadd.f32 %v1109, %v1201
  %v1230 = vadd.f32 %v1110, %v1175
  %v1231 = vadd.f32 %v1111, %v1204
  %v1232 = vadd.f32 %v1112, %v1178
  %v1233 = vadd.f32 %v1113, %v1207
  %v1234 = vadd.f32 %v1114, %v1181
  %v1235 = vadd.f32 %v1115, %v1210
  %1236 = vst [vmem:[%s8 + $0x10] sm:$0xff] %v1228
  %1237 = vst [vmem:[%s8 + $0x18] sm:$0xff] %v1229
  %1238 = vst [vmem:[%s8 + $0x30] sm:$0xff] %v1230
  %1239 = vst [vmem:[%s8 + $0x38] sm:$0xff] %v1231
  %1240 = vst [vmem:[%s8 + $0x50] sm:$0xff] %v1232
  %1241 = vst [vmem:[%s8 + $0x58] sm:$0xff] %v1233
  %1242 = vst [vmem:[%s8 + $0x70] sm:$0xff] %v1234
  %1243 = vst [vmem:[%s8 + $0x78] sm:$0xff] %v1235
  // Predicated region
  $region34: #{res_gen_block.3} parent=0 // pred_check
    _
  $region35: #{res_gen_block.3} parent=0 // pred_check_branch
    %1245 = sbr.rel (0) target = $region37
  $region36: #{res_gen_block.3} parent=0 // pred_region
    _
  $region37: #{res_gen_block.3} parent=0 // pred_fallthru
    _
  // Predicated region
  $region38: #{res_gen_block.3} parent=0 // pred_check
    _
  $region39: #{res_gen_block.3} parent=0 // pred_check_branch
    %1247 = sbr.rel (0) target = $region41
  $region40: #{res_gen_block.3} parent=0 // pred_region
    _
  $region41: #{res_gen_block.3} parent=0 // pred_fallthru
    _

</llo_original>
